<compile_context>
chip_gen: v7x
topology: tpu7x:2x2x1
jax: 0.10.0
libtpu: 0.0.40
codegen_flags: <defaults>
</compile_context>

<pallas_src>
import math

import jax
import jax.numpy as jnp
import numpy as np
from jax.experimental import pallas as pl
from jax.experimental.pallas import tpu as pltpu
from jax.scipy.linalg import block_diag

LANE = 128


def _softplus(u):
    # Numerically-stable softplus (same math as torch.nn.Softplus, beta=1).
    return jnp.maximum(u, 0.0) + jnp.log1p(jnp.exp(-jnp.abs(u)))


# ---------------------------------------------------------------------------
# Kernel body: whole fused forward for one batch tile (batch on lanes).
# ---------------------------------------------------------------------------
def _deep_basis_kernel(z_ref, w1_ref, w2_ref, w3_ref, w4_ref,
                       bias_ref, wmix_ref, out_ref):
    # z_ref   : [2*data_dim, B_tile]     (x rows stacked over y rows)
    # w*_ref  : block-diagonal fused weights, [out, in]
    # bias_ref: [3*H + O, 1]             (b1 | b2 | b3 | b4 concatenated)
    # wmix_ref: [nb*bd, 1]               (softplus(mix) already applied)
    # out_ref : [1, B_tile]              (lane-dense output slab)
    H = w1_ref.shape[0]        # 2 * n_basis * nn_width
    O = w4_ref.shape[0]        # 2 * n_basis * basis_dim
    nbd = O // 2               # n_basis * basis_dim

    b = bias_ref[...]
    b1, b2, b3, b4 = b[0:H], b[H:2 * H], b[2 * H:3 * H], b[3 * H:3 * H + O]

    h = _softplus(jnp.dot(w1_ref[...], z_ref[...],
                          preferred_element_type=jnp.float32) + b1)
    h = _softplus(jnp.dot(w2_ref[...], h,
                          preferred_element_type=jnp.float32) + b2)
    h = _softplus(jnp.dot(w3_ref[...], h,
                          preferred_element_type=jnp.float32) + b3)
    u = jnp.dot(w4_ref[...], h, preferred_element_type=jnp.float32) + b4
    f = jnp.tanh(0.5 * u)      # == sigmoid(u) * 2 - 1, exact identity

    fx, fy = f[:nbd], f[nbd:]  # x-net and y-net feature maps
    # Sublane reduce over (basis, basis_dim) rows -> lane-dense [1, B_tile].
    out_ref[...] = jnp.sum(wmix_ref[...] * fx * fy, axis=0, keepdims=True)


# ---------------------------------------------------------------------------
# Tiling: lane-multiple tiles, bounded last-tile waste, >= 2 grid steps when
# there is enough work so v7x's two TensorCores both get a share.
# ---------------------------------------------------------------------------
def _choose_tiling(batch, batch_tile):
    ntiles = max(1, -(-batch // LANE))           # minimal 128-lane tiles
    max_tps = max(1, batch_tile // LANE)         # max lane-tiles per grid step
    nsteps = -(-ntiles // max_tps)
    if ntiles >= 2:
        nsteps = max(nsteps, 2)                  # megacore sharding on v7x
    tps = -(-ntiles // nsteps)
    nsteps = -(-ntiles // tps)
    tb = tps * LANE
    return tb, tb * nsteps, nsteps


# ---------------------------------------------------------------------------
# Wrapper: batch-tiled grid, weights resident, lane-dense output.
# ---------------------------------------------------------------------------
def deep_basis_kernel_forward(x, y, packed, *, batch_tile=2048):
    w1, w2, w3, w4, bias_col, wmix_col = packed
    batch = x.shape[0]
    d2 = w1.shape[1]                             # 2 * data_dim
    tb, padded, _ = _choose_tiling(batch, batch_tile)

    # Fused input: x features on rows [0:d), y features on rows [d:2d),
    # batch on lanes; pad lanes up to the tiled extent (pad lanes are sliced
    # off after the call and never mix across lanes inside the kernel).
    z = jnp.concatenate([x.T, y.T], axis=0).astype(jnp.float32)
    z = jnp.pad(z, ((0, 0), (0, padded - batch)))

    resident = lambda a: pl.BlockSpec(a.shape, lambda i: (0, 0))
    out = pl.pallas_call(
        _deep_basis_kernel,
        out_shape=jax.ShapeDtypeStruct((1, padded), jnp.float32),
        grid=(padded // tb,),
        in_specs=[pl.BlockSpec((d2, tb), lambda i: (0, i)),
                  resident(w1), resident(w2), resident(w3), resident(w4),
                  resident(bias_col), resident(wmix_col)],
        out_specs=pl.BlockSpec((1, tb), lambda i: (0, i)),
        compiler_params=pltpu.CompilerParams(
            dimension_semantics=("parallel",),
            vmem_limit_bytes=32 * 1024 * 1024,   # footprint is ~1 MB; ample
        ),
    )(z, w1, w2, w3, w4, bias_col, wmix_col)

    return out[0, :batch]                        # [batch]


# ---------------------------------------------------------------------------
# Parameter construction (mirrors the PyTorch __init__: xavier_uniform with
# gain, constant bias fill) + consolidation into the fused kernel layout.
# ---------------------------------------------------------------------------
def _xavier_uniform(key, fan_in, fan_out, gain):
    bound = gain * math.sqrt(6.0 / (fan_in + fan_out))
    return jax.random.uniform(key, (fan_in, fan_out), jnp.float32, -bound, bound)


def init_deep_basis_params(key, n_basis, data_dim, basis_dim,
                           init_gain=0.5, init_bias=0.001, init_std=1.0,
                           nn_width=5):
    layer_dims = [(data_dim, nn_width), (nn_width, nn_width),
                  (nn_width, nn_width), (nn_width, basis_dim)]

    def make_net(key):
        ws, bs = [], []
        for fi, fo in layer_dims:
            key, sub = jax.random.split(key)
            ws.append(_xavier_uniform(sub, fi, fo, init_gain))   # [in, out]
            bs.append(jnp.full((fo,), init_bias, jnp.float32))
        return (ws, bs), key

    x_nets, y_nets = [], []
    for _ in range(n_basis):
        net, key = make_net(key); x_nets.append(net)
        net, key = make_net(key); y_nets.append(net)

    key, sub = jax.random.split(key)
    mix = jax.random.normal(sub, (n_basis,), jnp.float32) * init_std
    return x_nets, y_nets, mix


def pack_fused_params(x_nets, y_nets, mix, basis_dim):
    """Fuse all x-bases and y-bases into ONE block-diagonal MLP ([out,in])."""
    nets = list(x_nets) + list(y_nets)           # x bases first, then y bases
    # Layer 1: each half shares its own input -> stack per-basis rows, then
    # block-diag the x half against the y half.
    w1 = block_diag(jnp.concatenate([ws[0].T for ws, _ in x_nets], axis=0),
                    jnp.concatenate([ws[0].T for ws, _ in y_nets], axis=0))
    # Layers 2-4: block-diagonal over every (net, basis) block; off-diagonal
    # blocks are exact zeros so per-basis / per-net isolation is preserved.
    w2 = block_diag(*[ws[1].T for ws, _ in nets])
    w3 = block_diag(*[ws[2].T for ws, _ in nets])
    w4 = block_diag(*[ws[3].T for ws, _ in nets])

    def bias(idx):
        return jnp.concatenate([bs[idx] for _, bs in nets])

    bias_col = jnp.concatenate([bias(0), bias(1), bias(2), bias(3)])[:, None]
    # softplus(mix) hoisted out of the kernel (pre-activated, replicated per
    # basis_dim row of the x-half of the fused output).
    wmix_col = _softplus(jnp.repeat(mix, basis_dim))[:, None]
    return (w1, w2, w3, w4, bias_col, wmix_col)


# ---------------------------------------------------------------------------
# Pure-JAX reference: per-basis loop on the raw (unpacked) weights, exactly
# the original module semantics (sigmoid*2-1, separate x/y nets).
# ---------------------------------------------------------------------------
def _reference(x, y, x_nets, y_nets, mix):
    def mlp(z, net):
        ws, bs = net
        h = _softplus(z @ ws[0] + bs[0])
        h = _softplus(h @ ws[1] + bs[1])
        h = _softplus(h @ ws[2] + bs[2])
        return jax.nn.sigmoid(h @ ws[3] + bs[3]) * 2.0 - 1.0

    total = jnp.zeros((x.shape[0],), jnp.float32)
    for i in range(len(x_nets)):
        fx = mlp(x, x_nets[i])
        fy = mlp(y, y_nets[i])
        total = total + jnp.sum(jax.nn.softplus(mix[i]) * fx * fy, axis=1)
    return total


if __name__ == "__main__":
    # Full-precision reference matmuls (TPU default precision would otherwise
    # add bf16 noise on the reference side of the comparison).
    jax.config.update("jax_default_matmul_precision", "highest")

    data_dim = 3
    n_basis, basis_dim, nn_width = 3, 4, 5

    key = jax.random.PRNGKey(0)
    kp, kx, ky = jax.random.split(key, 3)

    x_nets, y_nets, mix = init_deep_basis_params(
        kp, n_basis, data_dim, basis_dim,
        init_gain=0.5, init_bias=0.001, init_std=1.0, nn_width=nn_width)

    packed = pack_fused_params(x_nets, y_nets, mix, basis_dim)

    # Case 1: tiny batch (single lane tile, grid=1).
    # Case 2: batch forcing >=2 grid steps with lane padding (300 -> tb=256).
    # Case 3: larger batch exercising the adaptive tile picker (1100, tile cap 512).
    for batch, tile in ((8, 2048), (300, 2048), (1100, 512)):
        kxb, kyb = jax.random.fold_in(kx, batch), jax.random.fold_in(ky, batch)
        x = jax.random.normal(kxb, (batch, data_dim), jnp.float32)
        y = jax.random.normal(kyb, (batch, data_dim), jnp.float32)

        out = deep_basis_kernel_forward(x, y, packed, batch_tile=tile)
        out = jax.block_until_ready(out)

        ref = _reference(x, y, x_nets, y_nets, mix)
        np.testing.assert_allclose(np.asarray(out), np.asarray(ref),
                                   rtol=1e-4, atol=1e-5)

    print("KERNEL_OK")
</pallas_src>

<mosaic_0001>
module attributes {stable_mosaic.version = 11 : i64} {
  func.func @_deep_basis_kernel(%arg0: i32, %arg1: memref<6x128xf32, #tpu.memory_space<vmem>>, %arg2: memref<30x6xf32, #tpu.memory_space<vmem>>, %arg3: memref<30x30xf32, #tpu.memory_space<vmem>>, %arg4: memref<30x30xf32, #tpu.memory_space<vmem>>, %arg5: memref<24x30xf32, #tpu.memory_space<vmem>>, %arg6: memref<114x1xf32, #tpu.memory_space<vmem>>, %arg7: memref<12x1xf32, #tpu.memory_space<vmem>>, %arg8: memref<1x128xf32, #tpu.memory_space<vmem>>) attributes {dimension_semantics = [#tpu.dimension_semantics<parallel>], iteration_bounds = array<i64: 1>, scalar_prefetch = 0 : i64, scratch_operands = 0 : i64, tpu.core_type = #tpu.core_type<tc>, window_params = [{transform_indices = @transform_0, window_bounds = array<i64: 6, 128>}, {pipeline_mode = #tpu.pipeline_mode<synchronous>, transform_indices = @transform_1, window_bounds = array<i64: 30, 6>}, {pipeline_mode = #tpu.pipeline_mode<synchronous>, transform_indices = @transform_2, window_bounds = array<i64: 30, 30>}, {pipeline_mode = #tpu.pipeline_mode<synchronous>, transform_indices = @transform_3, window_bounds = array<i64: 30, 30>}, {pipeline_mode = #tpu.pipeline_mode<synchronous>, transform_indices = @transform_4, window_bounds = array<i64: 24, 30>}, {pipeline_mode = #tpu.pipeline_mode<synchronous>, transform_indices = @transform_5, window_bounds = array<i64: 114, 1>}, {pipeline_mode = #tpu.pipeline_mode<synchronous>, transform_indices = @transform_6, window_bounds = array<i64: 12, 1>}, {transform_indices = @transform_7, window_bounds = array<i64: 1, 128>}]} {
    %c0 = arith.constant 0 : index
    %c0_0 = arith.constant 0 : index
    %0 = vector.load %arg6[%c0, %c0_0] : memref<114x1xf32, #tpu.memory_space<vmem>>, vector<114x1xf32>
    %1 = vector.extract_strided_slice %0 {offsets = [0, 0], sizes = [30, 1], strides = [1, 1]} : vector<114x1xf32> to vector<30x1xf32>
    %2 = vector.extract_strided_slice %0 {offsets = [30, 0], sizes = [30, 1], strides = [1, 1]} : vector<114x1xf32> to vector<30x1xf32>
    %3 = vector.extract_strided_slice %0 {offsets = [60, 0], sizes = [30, 1], strides = [1, 1]} : vector<114x1xf32> to vector<30x1xf32>
    %4 = vector.extract_strided_slice %0 {offsets = [90, 0], sizes = [24, 1], strides = [1, 1]} : vector<114x1xf32> to vector<24x1xf32>
    %c0_1 = arith.constant 0 : index
    %c0_2 = arith.constant 0 : index
    %5 = vector.load %arg2[%c0_1, %c0_2] : memref<30x6xf32, #tpu.memory_space<vmem>>, vector<30x6xf32>
    %c0_3 = arith.constant 0 : index
    %c0_4 = arith.constant 0 : index
    %6 = vector.load %arg1[%c0_3, %c0_4] : memref<6x128xf32, #tpu.memory_space<vmem>>, vector<6x128xf32>
    %cst = arith.constant dense<0.000000e+00> : vector<30x128xf32>
    %7 = tpu.matmul %5, %6, %cst {dimension_numbers = #tpu.dot_dimension_numbers<[1], [0], [0], [1], [0, 0, 1, 1], [], []>, precision = #tpu.contract_precision<fp32>} : vector<30x6xf32>, vector<6x128xf32>, vector<30x128xf32> -> vector<30x128xf32>
    %8 = vector.broadcast %1 : vector<30x1xf32> to vector<30x128xf32>
    %9 = arith.addf %7, %8 : vector<30x128xf32>
    %cst_5 = arith.constant 0.000000e+00 : f32
    %10 = vector.broadcast %cst_5 : f32 to vector<30x128xf32>
    %11 = arith.maximumf %9, %10 : vector<30x128xf32>
    %12 = math.absf %9 : vector<30x128xf32>
    %cst_6 = arith.constant 0.000000e+00 : f32
    %13 = vector.broadcast %cst_6 : f32 to vector<30x128xf32>
    %14 = arith.subf %13, %12 : vector<30x128xf32>
    %15 = math.exp %14 : vector<30x128xf32>
    %16 = math.log1p %15 : vector<30x128xf32>
    %17 = arith.addf %11, %16 : vector<30x128xf32>
    %c0_7 = arith.constant 0 : index
    %c0_8 = arith.constant 0 : index
    %18 = vector.load %arg3[%c0_7, %c0_8] : memref<30x30xf32, #tpu.memory_space<vmem>>, vector<30x30xf32>
    %cst_9 = arith.constant dense<0.000000e+00> : vector<30x128xf32>
    %19 = tpu.matmul %18, %17, %cst_9 {dimension_numbers = #tpu.dot_dimension_numbers<[1], [0], [0], [1], [0, 0, 1, 1], [], []>, precision = #tpu.contract_precision<fp32>} : vector<30x30xf32>, vector<30x128xf32>, vector<30x128xf32> -> vector<30x128xf32>
    %20 = vector.broadcast %2 : vector<30x1xf32> to vector<30x128xf32>
    %21 = arith.addf %19, %20 : vector<30x128xf32>
    %cst_10 = arith.constant 0.000000e+00 : f32
    %22 = vector.broadcast %cst_10 : f32 to vector<30x128xf32>
    %23 = arith.maximumf %21, %22 : vector<30x128xf32>
    %24 = math.absf %21 : vector<30x128xf32>
    %cst_11 = arith.constant 0.000000e+00 : f32
    %25 = vector.broadcast %cst_11 : f32 to vector<30x128xf32>
    %26 = arith.subf %25, %24 : vector<30x128xf32>
    %27 = math.exp %26 : vector<30x128xf32>
    %28 = math.log1p %27 : vector<30x128xf32>
    %29 = arith.addf %23, %28 : vector<30x128xf32>
    %c0_12 = arith.constant 0 : index
    %c0_13 = arith.constant 0 : index
    %30 = vector.load %arg4[%c0_12, %c0_13] : memref<30x30xf32, #tpu.memory_space<vmem>>, vector<30x30xf32>
    %cst_14 = arith.constant dense<0.000000e+00> : vector<30x128xf32>
    %31 = tpu.matmul %30, %29, %cst_14 {dimension_numbers = #tpu.dot_dimension_numbers<[1], [0], [0], [1], [0, 0, 1, 1], [], []>, precision = #tpu.contract_precision<fp32>} : vector<30x30xf32>, vector<30x128xf32>, vector<30x128xf32> -> vector<30x128xf32>
    %32 = vector.broadcast %3 : vector<30x1xf32> to vector<30x128xf32>
    %33 = arith.addf %31, %32 : vector<30x128xf32>
    %cst_15 = arith.constant 0.000000e+00 : f32
    %34 = vector.broadcast %cst_15 : f32 to vector<30x128xf32>
    %35 = arith.maximumf %33, %34 : vector<30x128xf32>
    %36 = math.absf %33 : vector<30x128xf32>
    %cst_16 = arith.constant 0.000000e+00 : f32
    %37 = vector.broadcast %cst_16 : f32 to vector<30x128xf32>
    %38 = arith.subf %37, %36 : vector<30x128xf32>
    %39 = math.exp %38 : vector<30x128xf32>
    %40 = math.log1p %39 : vector<30x128xf32>
    %41 = arith.addf %35, %40 : vector<30x128xf32>
    %c0_17 = arith.constant 0 : index
    %c0_18 = arith.constant 0 : index
    %42 = vector.load %arg5[%c0_17, %c0_18] : memref<24x30xf32, #tpu.memory_space<vmem>>, vector<24x30xf32>
    %cst_19 = arith.constant dense<0.000000e+00> : vector<24x128xf32>
    %43 = tpu.matmul %42, %41, %cst_19 {dimension_numbers = #tpu.dot_dimension_numbers<[1], [0], [0], [1], [0, 0, 1, 1], [], []>, precision = #tpu.contract_precision<fp32>} : vector<24x30xf32>, vector<30x128xf32>, vector<24x128xf32> -> vector<24x128xf32>
    %44 = vector.broadcast %4 : vector<24x1xf32> to vector<24x128xf32>
    %45 = arith.addf %43, %44 : vector<24x128xf32>
    %cst_20 = arith.constant 5.000000e-01 : f32
    %46 = vector.broadcast %cst_20 : f32 to vector<24x128xf32>
    %47 = arith.mulf %46, %45 : vector<24x128xf32>
    %48 = math.tanh %47 : vector<24x128xf32>
    %49 = vector.extract_strided_slice %48 {offsets = [0, 0], sizes = [12, 128], strides = [1, 1]} : vector<24x128xf32> to vector<12x128xf32>
    %50 = vector.extract_strided_slice %48 {offsets = [12, 0], sizes = [12, 128], strides = [1, 1]} : vector<24x128xf32> to vector<12x128xf32>
    %c0_21 = arith.constant 0 : index
    %c0_22 = arith.constant 0 : index
    %51 = vector.load %arg7[%c0_21, %c0_22] : memref<12x1xf32, #tpu.memory_space<vmem>>, vector<12x1xf32>
    %52 = vector.broadcast %51 : vector<12x1xf32> to vector<12x128xf32>
    %53 = arith.mulf %52, %49 : vector<12x128xf32>
    %54 = arith.mulf %53, %50 : vector<12x128xf32>
    %cst_23 = arith.constant dense<0.000000e+00> : vector<128xf32>
    %55 = vector.multi_reduction <add>, %54, %cst_23 [0] : vector<12x128xf32> to vector<128xf32>
    %56 = vector.shape_cast %55 : vector<128xf32> to vector<1x128xf32>
    %c0_24 = arith.constant 0 : index
    %c0_25 = arith.constant 0 : index
    %57 = vector.load %arg8[%c0_24, %c0_25] : memref<1x128xf32, #tpu.memory_space<vmem>>, vector<1x128xf32>
    tpu.vector_store %arg8[%c0_24, %c0_25], %56 {strides = array<i32>} : memref<1x128xf32, #tpu.memory_space<vmem>>, vector<1x128xf32>,
    return
  }
  func.func @transform_0(%arg0: i32) -> (i32, i32) {
    %c0_i32 = arith.constant 0 : i32
    %c0_i32_0 = arith.constant 0 : i32
    return %c0_i32, %arg0 : i32, i32
  }
  func.func @transform_1(%arg0: i32) -> (i32, i32) {
    %c0_i32 = arith.constant 0 : i32
    %c0_i32_0 = arith.constant 0 : i32
    %c0_i32_1 = arith.constant 0 : i32
    return %c0_i32, %c0_i32_0 : i32, i32
  }
  func.func @transform_2(%arg0: i32) -> (i32, i32) {
    %c0_i32 = arith.constant 0 : i32
    %c0_i32_0 = arith.constant 0 : i32
    %c0_i32_1 = arith.constant 0 : i32
    return %c0_i32, %c0_i32_0 : i32, i32
  }
  func.func @transform_3(%arg0: i32) -> (i32, i32) {
    %c0_i32 = arith.constant 0 : i32
    %c0_i32_0 = arith.constant 0 : i32
    %c0_i32_1 = arith.constant 0 : i32
    return %c0_i32, %c0_i32_0 : i32, i32
  }
  func.func @transform_4(%arg0: i32) -> (i32, i32) {
    %c0_i32 = arith.constant 0 : i32
    %c0_i32_0 = arith.constant 0 : i32
    %c0_i32_1 = arith.constant 0 : i32
    return %c0_i32, %c0_i32_0 : i32, i32
  }
  func.func @transform_5(%arg0: i32) -> (i32, i32) {
    %c0_i32 = arith.constant 0 : i32
    %c0_i32_0 = arith.constant 0 : i32
    %c0_i32_1 = arith.constant 0 : i32
    return %c0_i32, %c0_i32_0 : i32, i32
  }
  func.func @transform_6(%arg0: i32) -> (i32, i32) {
    %c0_i32 = arith.constant 0 : i32
    %c0_i32_0 = arith.constant 0 : i32
    %c0_i32_1 = arith.constant 0 : i32
    return %c0_i32, %c0_i32_0 : i32, i32
  }
  func.func @transform_7(%arg0: i32) -> (i32, i32) {
    %c0_i32 = arith.constant 0 : i32
    %c0_i32_0 = arith.constant 0 : i32
    return %c0_i32, %arg0 : i32, i32
  }
}

</mosaic_0001>

<llo_original>
// kernel: tpu_custom_call.1
$region0: #{tpu_custom_call.1}
  #allocation0 [shape = 'u32[]', space=smem, size = 0x4, offset = 0x4, fixed_abs, tag = 'smem constant byte address 0x4 - core index']
  #allocation1 [shape = 'u32[144,128]{1,0:T(1,128)}', space=vmem, size = 0x12000, scoped, tag = 'internal scratch']
  %s0 = inlined_call_operand.vmem [shape: f32[6,128], index: 0, kind: input, shape index: {}]
  %s1 = inlined_call_operand.vmem [shape: f32[30,6], index: 1, kind: input, shape index: {}]
  %s2 = inlined_call_operand.vmem [shape: f32[30,30], index: 2, kind: input, shape index: {}]
  %s3 = inlined_call_operand.vmem [shape: f32[30,30], index: 3, kind: input, shape index: {}]
  %s4 = inlined_call_operand.vmem [shape: f32[24,30], index: 4, kind: input, shape index: {}]
  %s5 = inlined_call_operand.vmem [shape: f32[114,1], index: 5, kind: input, shape index: {}]
  %s6 = inlined_call_operand.vmem [shape: f32[12,1], index: 6, kind: input, shape index: {}]
  %s7 = inlined_call_operand.hbm [shape: f32[1,128], index: 7, kind: output, shape index: {}]
  %s8 = sld [smem:[#allocation0]]
  $region38: #{tpu_custom_call.1} parent=0
    _
  %s10 = ssub.s32 1, %s8
  %s11 = scalar_select 0, %s10, %s8
  $region1: #{tpu_custom_call.1} parent=0
    #allocation2 [shape = 'u8[512]{0}', space=vmem, size = 0x400, scoped, tag = 'output window, operand 0, single buffered']
    #allocation3 [shape = 's32[1]{0}', space=sflag, size = 0x4, scoped, tag = 'scoped memory for tpu_custom_call.1']
    %12 = vsyncpa [#allocation3], 0
    // Predicated region
    $region2: #{tpu_custom_call.1} parent=1 // pred_check
      _
    $region3: #{tpu_custom_call.1} parent=1 // pred_check_branch
      %14 = sbr.rel (0) target = $region5
    $region4: #{tpu_custom_call.1} parent=1 // pred_region
      _
    $region5: #{tpu_custom_call.1} parent=1 // pred_fallthru
      _
    // Predicated region
    $region6: #{tpu_custom_call.1} parent=1 // pred_check
      _
    $region7: #{tpu_custom_call.1} parent=1 // pred_check_branch
      %16 = sbr.rel (0) target = $region9
    $region8: #{tpu_custom_call.1} parent=1 // pred_region
      _
    $region9: #{tpu_custom_call.1} parent=1 // pred_fallthru
      _
    // Predicated region
    $region10: #{tpu_custom_call.1} parent=1 // pred_check
      _
    $region11: #{tpu_custom_call.1} parent=1 // pred_check_branch
      %18 = sbr.rel (0) target = $region13
    $region12: #{tpu_custom_call.1} parent=1 // pred_region
      _
    $region13: #{tpu_custom_call.1} parent=1 // pred_fallthru
      _
    // Predicated region
    $region14: #{tpu_custom_call.1} parent=1 // pred_check
      _
    $region15: #{tpu_custom_call.1} parent=1 // pred_check_branch
      %20 = sbr.rel (0) target = $region17
    $region16: #{tpu_custom_call.1} parent=1 // pred_region
      _
    $region17: #{tpu_custom_call.1} parent=1 // pred_fallthru
      _
    // Predicated region
    $region18: #{tpu_custom_call.1} parent=1 // pred_check
      _
    $region19: #{tpu_custom_call.1} parent=1 // pred_check_branch
      %22 = sbr.rel (0) target = $region21
    $region20: #{tpu_custom_call.1} parent=1 // pred_region
      _
    $region21: #{tpu_custom_call.1} parent=1 // pred_fallthru
      _
    // Predicated region
    $region22: #{tpu_custom_call.1} parent=1 // pred_check
      _
    $region23: #{tpu_custom_call.1} parent=1 // pred_check_branch
      %24 = sbr.rel (0) target = $region25
    $region24: #{tpu_custom_call.1} parent=1 // pred_region
      _
    $region25: #{tpu_custom_call.1} parent=1 // pred_fallthru
      _
    // Predicated region
    $region26: #{tpu_custom_call.1} parent=1 // pred_check
      _
    $region27: #{tpu_custom_call.1} parent=1 // pred_check_branch
      %26 = sbr.rel (0) target = $region29
    $region28: #{tpu_custom_call.1} parent=1 // pred_region
      _
    $region29: #{tpu_custom_call.1} parent=1 // pred_fallthru
      _
    %v27 = vld [vmem:[%s5] sm:$0xff]
    %v28 = vld [vmem:[%s5 + $0x8] sm:$0xff]
    %v29 = vld [vmem:[%s5 + $0x10] sm:$0xff]
    %v30 = vld [vmem:[%s5 + $0x18] sm:$0xff]
    %v31 = vld [vmem:[%s5 + $0x20] sm:$0xff]
    %v32 = vld [vmem:[%s5 + $0x28] sm:$0xff]
    %v33 = vld [vmem:[%s5 + $0x30] sm:$0xff]
    %v34 = vld [vmem:[%s5 + $0x38] sm:$0xff]
    %v35 = vld [vmem:[%s5 + $0x40] sm:$0xff]
    %v36 = vld [vmem:[%s5 + $0x48] sm:$0xff]
    %v37 = vld [vmem:[%s5 + $0x50] sm:$0xff]
    %v38 = vld [vmem:[%s5 + $0x58] sm:$0xff]
    %v39 = vld [vmem:[%s5 + $0x60] sm:$0xff]
    %v40 = vld [vmem:[%s5 + $0x68] sm:$0xff]
    %v41 = vld [vmem:[%s5 + $0x70] sm:$0x3]
    %v42 = vld [vmem:[%s1] sm:$0xff]
    %v43 = vld [vmem:[%s1 + $0x8] sm:$0xff]
    %v44 = vld [vmem:[%s1 + $0x10] sm:$0xff]
    %v45 = vld [vmem:[%s1 + $0x18] sm:$0x3f]
    %v46 = vld [vmem:[%s0] sm:$0x3f]
    %48 = vset.pattern.permute.xlu0 0
    %49 = vperm.xlu0 %48, %v27
    %v50 = vpop.permute.xlu0 %49
    %53 = vset.pattern.permute.xlu0 0
    %54 = vperm.xlu0 %53, %v28
    %v55 = vpop.permute.xlu0 %54
    %58 = vset.pattern.permute.xlu0 0
    %59 = vperm.xlu0 %58, %v29
    %v60 = vpop.permute.xlu0 %59
    %63 = vset.pattern.permute.xlu0 0
    %64 = vperm.xlu0 %63, %v30
    %v65 = vpop.permute.xlu0 %64
    %vm67 = vcmask 48128
    %v69 = vsel %vm67, %v42, 0
    %v72 = vsel %vm67, %v43, 0
    %v75 = vsel %vm67, %v44, 0
    %v78 = vsel %vm67, %v45, 0
    %vm80 = vcmask 1045504
    %v82 = vsel %vm80, %v46, 0
    %84 = vmatprep.subr.mxu0 0.0
    %v85 = vand.u32 %v82, 4294901760
    %86 = vmatpush1.msra.mxu0 %v85
    %87 = vmatprep.subr.mxu0 0.0
    %88 = vmatpush1.msra.mxu0 0.0
    %89 = vmatprep.subr.mxu0 0.0
    %90 = vmatpush1.msra.mxu0 0.0
    %91 = vmatprep.subr.mxu0 0.0
    %92 = vmatpush1.msra.mxu0 0.0
    %93 = vmatprep.subr.mxu0 0.0
    %94 = vmatpush1.msra.mxu0 0.0
    %95 = vmatprep.subr.mxu0 0.0
    %96 = vmatpush1.msra.mxu0 0.0
    %97 = vmatprep.subr.mxu0 0.0
    %98 = vmatpush1.msra.mxu0 0.0
    %99 = vmatprep.subr.mxu0 0.0
    %100 = vmatpush1.msra.mxu0 0.0
    %101 = vmatprep.subr.mxu0 0.0
    %102 = vmatpush1.msra.mxu0 0.0
    %103 = vmatprep.subr.mxu0 0.0
    %104 = vmatpush1.msra.mxu0 0.0
    %105 = vmatprep.subr.mxu0 0.0
    %106 = vmatpush1.msra.mxu0 0.0
    %107 = vmatprep.subr.mxu0 0.0
    %108 = vmatpush1.msra.mxu0 0.0
    %109 = vmatprep.subr.mxu0 0.0
    %110 = vmatpush1.msra.mxu0 0.0
    %111 = vmatprep.subr.mxu0 0.0
    %112 = vmatpush1.msra.mxu0 0.0
    %113 = vmatprep.subr.mxu0 0.0
    %114 = vmatpush1.msra.mxu0 0.0
    %115 = vmatprep.subr.mxu0 0.0
    %116 = vmatpush1.msra.mxu0 0.0
    %117 = vmatprep.subr.mxu0 0.0
    %118 = vmatpush1.msra.mxu0 0.0
    %119 = vmatprep.subr.mxu0 0.0
    %120 = vmatpush1.msra.mxu0 0.0
    %121 = vmatprep.subr.mxu0 0.0
    %122 = vmatpush1.msra.mxu0 0.0
    %123 = vmatprep.subr.mxu0 0.0
    %124 = vmatpush1.msra.mxu0 0.0
    %125 = vmatprep.subr.mxu0 0.0
    %126 = vmatpush1.msra.mxu0 0.0
    %127 = vmatprep.subr.mxu0 0.0
    %128 = vmatpush1.msra.mxu0 0.0
    %129 = vmatprep.subr.mxu0 0.0
    %130 = vmatpush1.msra.mxu0 0.0
    %131 = vmatprep.subr.mxu0 0.0
    %132 = vmatpush1.msra.mxu0 0.0
    %133 = vmatprep.subr.mxu0 0.0
    %134 = vmatpush1.msra.mxu0 0.0
    %135 = vmatprep.subr.mxu0 0.0
    %136 = vmatpush1.msra.mxu0 0.0
    %137 = vmatprep.subr.mxu0 0.0
    %138 = vmatpush1.msra.mxu0 0.0
    %139 = vmatprep.subr.mxu0 0.0
    %140 = vmatpush1.msra.mxu0 0.0
    %141 = vmatprep.subr.mxu0 0.0
    %142 = vmatpush1.msra.mxu0 0.0
    %143 = vmatprep.subr.mxu0 0.0
    %144 = vmatpush1.msra.mxu0 0.0
    %145 = vmatprep.subr.mxu0 0.0
    %146 = vmatpush1.msra.mxu0 0.0
    %147 = vmatprep.subr.mxu0 0.0
    %148 = vmatpush1.msra.mxu0 0.0
    %149 = vmatprep.mubr.f32.mxu0 0.0
    %v150 = vand.u32 %v69, 4294901760
    %v151 = vsub.f32 %v69, %v150
    %v152 = vand.u32 %v151, 4294901760
    %v153 = vsub.f32 %v151, %v152
    %v154 = vand.u32 %v153, 4294901760
    %155 = vmatmul.mubr.f32.gmra.mrb[0].mxu0 %v154
    %v156 = vpop.f32.mrb[0].mxu0
    %v157 = vadd.f32 %v50, %v156
    %v158 = vpop.f32.mrb[0].mxu0
    %159 = vmatprep.mubr.f32.mxu0 0.0
    %v160 = vand.u32 %v72, 4294901760
    %v161 = vsub.f32 %v72, %v160
    %v162 = vand.u32 %v161, 4294901760
    %v163 = vsub.f32 %v161, %v162
    %v164 = vand.u32 %v163, 4294901760
    %165 = vmatmul.mubr.f32.gmra.mrb[0].mxu0 %v164
    %v166 = vpop.f32.mrb[0].mxu0
    %v167 = vadd.f32 %v55, %v166
    %v168 = vpop.f32.mrb[0].mxu0
    %169 = vmatprep.mubr.f32.mxu0 0.0
    %v170 = vand.u32 %v75, 4294901760
    %v171 = vsub.f32 %v75, %v170
    %v172 = vand.u32 %v171, 4294901760
    %v173 = vsub.f32 %v171, %v172
    %v174 = vand.u32 %v173, 4294901760
    %175 = vmatmul.mubr.f32.gmra.mrb[0].mxu0 %v174
    %v176 = vpop.f32.mrb[0].mxu0
    %v177 = vadd.f32 %v60, %v176
    %v178 = vpop.f32.mrb[0].mxu0
    %179 = vmatprep.mubr.f32.mxu0 0.0
    %v180 = vand.u32 %v78, 4294901760
    %v181 = vsub.f32 %v78, %v180
    %v182 = vand.u32 %v181, 4294901760
    %v183 = vsub.f32 %v181, %v182
    %v184 = vand.u32 %v183, 4294901760
    %185 = vmatmul.mubr.f32.gmra.mrb[0].mxu0 %v184
    %v186 = vpop.f32.mrb[0].mxu0
    %v187 = vadd.f32 %v65, %v186
    %v188 = vpop.f32.mrb[0].mxu0
    %189 = vdwg.mxu0
    %190 = vmatprep.subr.mxu0 0.0
    %v191 = vand.u32 %v82, 4294901760
    %v192 = vsub.f32 %v82, %v191
    %v193 = vand.u32 %v192, 4294901760
    %v194 = vsub.f32 %v192, %v193
    %v195 = vand.u32 %v194, 4294901760
    %196 = vmatpush1.msra.mxu0 %v195
    %197 = vmatprep.subr.mxu0 0.0
    %198 = vmatpush1.msra.mxu0 0.0
    %199 = vmatprep.subr.mxu0 0.0
    %200 = vmatpush1.msra.mxu0 0.0
    %201 = vmatprep.subr.mxu0 0.0
    %202 = vmatpush1.msra.mxu0 0.0
    %203 = vmatprep.subr.mxu0 0.0
    %204 = vmatpush1.msra.mxu0 0.0
    %205 = vmatprep.subr.mxu0 0.0
    %206 = vmatpush1.msra.mxu0 0.0
    %207 = vmatprep.subr.mxu0 0.0
    %208 = vmatpush1.msra.mxu0 0.0
    %209 = vmatprep.subr.mxu0 0.0
    %210 = vmatpush1.msra.mxu0 0.0
    %211 = vmatprep.subr.mxu0 0.0
    %212 = vmatpush1.msra.mxu0 0.0
    %213 = vmatprep.subr.mxu0 0.0
    %214 = vmatpush1.msra.mxu0 0.0
    %215 = vmatprep.subr.mxu0 0.0
    %216 = vmatpush1.msra.mxu0 0.0
    %217 = vmatprep.subr.mxu0 0.0
    %218 = vmatpush1.msra.mxu0 0.0
    %219 = vmatprep.subr.mxu0 0.0
    %220 = vmatpush1.msra.mxu0 0.0
    %221 = vmatprep.subr.mxu0 0.0
    %222 = vmatpush1.msra.mxu0 0.0
    %223 = vmatprep.subr.mxu0 0.0
    %224 = vmatpush1.msra.mxu0 0.0
    %225 = vmatprep.subr.mxu0 0.0
    %226 = vmatpush1.msra.mxu0 0.0
    %227 = vmatprep.subr.mxu0 0.0
    %228 = vmatpush1.msra.mxu0 0.0
    %229 = vmatprep.subr.mxu0 0.0
    %230 = vmatpush1.msra.mxu0 0.0
    %231 = vmatprep.subr.mxu0 0.0
    %232 = vmatpush1.msra.mxu0 0.0
    %233 = vmatprep.subr.mxu0 0.0
    %234 = vmatpush1.msra.mxu0 0.0
    %235 = vmatprep.subr.mxu0 0.0
    %236 = vmatpush1.msra.mxu0 0.0
    %237 = vmatprep.subr.mxu0 0.0
    %238 = vmatpush1.msra.mxu0 0.0
    %239 = vmatprep.subr.mxu0 0.0
    %240 = vmatpush1.msra.mxu0 0.0
    %241 = vmatprep.subr.mxu0 0.0
    %242 = vmatpush1.msra.mxu0 0.0
    %243 = vmatprep.subr.mxu0 0.0
    %244 = vmatpush1.msra.mxu0 0.0
    %245 = vmatprep.subr.mxu0 0.0
    %246 = vmatpush1.msra.mxu0 0.0
    %247 = vmatprep.subr.mxu0 0.0
    %248 = vmatpush1.msra.mxu0 0.0
    %249 = vmatprep.subr.mxu0 0.0
    %250 = vmatpush1.msra.mxu0 0.0
    %251 = vmatprep.subr.mxu0 0.0
    %252 = vmatpush1.msra.mxu0 0.0
    %253 = vmatprep.subr.mxu0 0.0
    %254 = vmatpush1.msra.mxu0 0.0
    %255 = vmatprep.subr.mxu0 0.0
    %256 = vmatpush1.msra.mxu0 0.0
    %257 = vmatprep.subr.mxu0 0.0
    %258 = vmatpush1.msra.mxu0 0.0
    %259 = vmatprep.mubr.f32.mxu0 0.0
    %v260 = vand.u32 %v69, 4294901760
    %261 = vmatmul.mubr.f32.gmra.mrb[0].mxu0 %v260
    %v262 = vpop.f32.mrb[0].mxu0
    %v263 = vadd.f32 %v157, %v262
    %v264 = vpop.f32.mrb[0].mxu0
    %265 = vmatprep.mubr.f32.mxu0 0.0
    %v266 = vand.u32 %v72, 4294901760
    %267 = vmatmul.mubr.f32.gmra.mrb[0].mxu0 %v266
    %v268 = vpop.f32.mrb[0].mxu0
    %v269 = vadd.f32 %v167, %v268
    %v270 = vpop.f32.mrb[0].mxu0
    %271 = vmatprep.mubr.f32.mxu0 0.0
    %v272 = vand.u32 %v75, 4294901760
    %273 = vmatmul.mubr.f32.gmra.mrb[0].mxu0 %v272
    %v274 = vpop.f32.mrb[0].mxu0
    %v275 = vadd.f32 %v177, %v274
    %v276 = vpop.f32.mrb[0].mxu0
    %277 = vmatprep.mubr.f32.mxu0 0.0
    %v278 = vand.u32 %v78, 4294901760
    %279 = vmatmul.mubr.f32.gmra.mrb[0].mxu0 %v278
    %v280 = vpop.f32.mrb[0].mxu0
    %v281 = vadd.f32 %v187, %v280
    %v282 = vpop.f32.mrb[0].mxu0
    %283 = vdwg.mxu0
    %284 = vmatprep.subr.mxu0 0.0
    %v285 = vand.u32 %v82, 4294901760
    %v286 = vsub.f32 %v82, %v285
    %287 = vmatpush1.msra.mxu0 %v286
    %288 = vmatprep.subr.mxu0 0.0
    %289 = vmatpush1.msra.mxu0 0.0
    %290 = vmatprep.subr.mxu0 0.0
    %291 = vmatpush1.msra.mxu0 0.0
    %292 = vmatprep.subr.mxu0 0.0
    %293 = vmatpush1.msra.mxu0 0.0
    %294 = vmatprep.subr.mxu0 0.0
    %295 = vmatpush1.msra.mxu0 0.0
    %296 = vmatprep.subr.mxu0 0.0
    %297 = vmatpush1.msra.mxu0 0.0
    %298 = vmatprep.subr.mxu0 0.0
    %299 = vmatpush1.msra.mxu0 0.0
    %300 = vmatprep.subr.mxu0 0.0
    %301 = vmatpush1.msra.mxu0 0.0
    %302 = vmatprep.subr.mxu0 0.0
    %303 = vmatpush1.msra.mxu0 0.0
    %304 = vmatprep.subr.mxu0 0.0
    %305 = vmatpush1.msra.mxu0 0.0
    %306 = vmatprep.subr.mxu0 0.0
    %307 = vmatpush1.msra.mxu0 0.0
    %308 = vmatprep.subr.mxu0 0.0
    %309 = vmatpush1.msra.mxu0 0.0
    %310 = vmatprep.subr.mxu0 0.0
    %311 = vmatpush1.msra.mxu0 0.0
    %312 = vmatprep.subr.mxu0 0.0
    %313 = vmatpush1.msra.mxu0 0.0
    %314 = vmatprep.subr.mxu0 0.0
    %315 = vmatpush1.msra.mxu0 0.0
    %316 = vmatprep.subr.mxu0 0.0
    %317 = vmatpush1.msra.mxu0 0.0
    %318 = vmatprep.subr.mxu0 0.0
    %319 = vmatpush1.msra.mxu0 0.0
    %320 = vmatprep.subr.mxu0 0.0
    %321 = vmatpush1.msra.mxu0 0.0
    %322 = vmatprep.subr.mxu0 0.0
    %323 = vmatpush1.msra.mxu0 0.0
    %324 = vmatprep.subr.mxu0 0.0
    %325 = vmatpush1.msra.mxu0 0.0
    %326 = vmatprep.subr.mxu0 0.0
    %327 = vmatpush1.msra.mxu0 0.0
    %328 = vmatprep.subr.mxu0 0.0
    %329 = vmatpush1.msra.mxu0 0.0
    %330 = vmatprep.subr.mxu0 0.0
    %331 = vmatpush1.msra.mxu0 0.0
    %332 = vmatprep.subr.mxu0 0.0
    %333 = vmatpush1.msra.mxu0 0.0
    %334 = vmatprep.subr.mxu0 0.0
    %335 = vmatpush1.msra.mxu0 0.0
    %336 = vmatprep.subr.mxu0 0.0
    %337 = vmatpush1.msra.mxu0 0.0
    %338 = vmatprep.subr.mxu0 0.0
    %339 = vmatpush1.msra.mxu0 0.0
    %340 = vmatprep.subr.mxu0 0.0
    %341 = vmatpush1.msra.mxu0 0.0
    %342 = vmatprep.subr.mxu0 0.0
    %343 = vmatpush1.msra.mxu0 0.0
    %344 = vmatprep.subr.mxu0 0.0
    %345 = vmatpush1.msra.mxu0 0.0
    %346 = vmatprep.subr.mxu0 0.0
    %347 = vmatpush1.msra.mxu0 0.0
    %348 = vmatprep.subr.mxu0 0.0
    %349 = vmatpush1.msra.mxu0 0.0
    %350 = vmatprep.mubr.f32.mxu0 0.0
    %v351 = vand.u32 %v69, 4294901760
    %v352 = vsub.f32 %v69, %v351
    %353 = vmatmul.mubr.f32.gmra.mrb[0].mxu0 %v352
    %v354 = vpop.f32.mrb[0].mxu0
    %v355 = vadd.f32 %v263, %v354
    %v356 = vpop.f32.mrb[0].mxu0
    %357 = vmatprep.mubr.f32.mxu0 0.0
    %v358 = vand.u32 %v72, 4294901760
    %v359 = vsub.f32 %v72, %v358
    %360 = vmatmul.mubr.f32.gmra.mrb[0].mxu0 %v359
    %v361 = vpop.f32.mrb[0].mxu0
    %v362 = vadd.f32 %v269, %v361
    %v363 = vpop.f32.mrb[0].mxu0
    %364 = vmatprep.mubr.f32.mxu0 0.0
    %v365 = vand.u32 %v75, 4294901760
    %v366 = vsub.f32 %v75, %v365
    %367 = vmatmul.mubr.f32.gmra.mrb[0].mxu0 %v366
    %v368 = vpop.f32.mrb[0].mxu0
    %v369 = vadd.f32 %v275, %v368
    %v370 = vpop.f32.mrb[0].mxu0
    %371 = vmatprep.mubr.f32.mxu0 0.0
    %v372 = vand.u32 %v78, 4294901760
    %v373 = vsub.f32 %v78, %v372
    %374 = vmatmul.mubr.f32.gmra.mrb[0].mxu0 %v373
    %v375 = vpop.f32.mrb[0].mxu0
    %v376 = vadd.f32 %v281, %v375
    %v377 = vpop.f32.mrb[0].mxu0
    %378 = vdwg.mxu0
    %379 = vmatprep.subr.mxu0 0.0
    %v380 = vand.u32 %v82, 4294901760
    %381 = vmatpush1.msra.mxu0 %v380
    %382 = vmatprep.subr.mxu0 0.0
    %383 = vmatpush1.msra.mxu0 0.0
    %384 = vmatprep.subr.mxu0 0.0
    %385 = vmatpush1.msra.mxu0 0.0
    %386 = vmatprep.subr.mxu0 0.0
    %387 = vmatpush1.msra.mxu0 0.0
    %388 = vmatprep.subr.mxu0 0.0
    %389 = vmatpush1.msra.mxu0 0.0
    %390 = vmatprep.subr.mxu0 0.0
    %391 = vmatpush1.msra.mxu0 0.0
    %392 = vmatprep.subr.mxu0 0.0
    %393 = vmatpush1.msra.mxu0 0.0
    %394 = vmatprep.subr.mxu0 0.0
    %395 = vmatpush1.msra.mxu0 0.0
    %396 = vmatprep.subr.mxu0 0.0
    %397 = vmatpush1.msra.mxu0 0.0
    %398 = vmatprep.subr.mxu0 0.0
    %399 = vmatpush1.msra.mxu0 0.0
    %400 = vmatprep.subr.mxu0 0.0
    %401 = vmatpush1.msra.mxu0 0.0
    %402 = vmatprep.subr.mxu0 0.0
    %403 = vmatpush1.msra.mxu0 0.0
    %404 = vmatprep.subr.mxu0 0.0
    %405 = vmatpush1.msra.mxu0 0.0
    %406 = vmatprep.subr.mxu0 0.0
    %407 = vmatpush1.msra.mxu0 0.0
    %408 = vmatprep.subr.mxu0 0.0
    %409 = vmatpush1.msra.mxu0 0.0
    %410 = vmatprep.subr.mxu0 0.0
    %411 = vmatpush1.msra.mxu0 0.0
    %412 = vmatprep.subr.mxu0 0.0
    %413 = vmatpush1.msra.mxu0 0.0
    %414 = vmatprep.subr.mxu0 0.0
    %415 = vmatpush1.msra.mxu0 0.0
    %416 = vmatprep.subr.mxu0 0.0
    %417 = vmatpush1.msra.mxu0 0.0
    %418 = vmatprep.subr.mxu0 0.0
    %419 = vmatpush1.msra.mxu0 0.0
    %420 = vmatprep.subr.mxu0 0.0
    %421 = vmatpush1.msra.mxu0 0.0
    %422 = vmatprep.subr.mxu0 0.0
    %423 = vmatpush1.msra.mxu0 0.0
    %424 = vmatprep.subr.mxu0 0.0
    %425 = vmatpush1.msra.mxu0 0.0
    %426 = vmatprep.subr.mxu0 0.0
    %427 = vmatpush1.msra.mxu0 0.0
    %428 = vmatprep.subr.mxu0 0.0
    %429 = vmatpush1.msra.mxu0 0.0
    %430 = vmatprep.subr.mxu0 0.0
    %431 = vmatpush1.msra.mxu0 0.0
    %432 = vmatprep.subr.mxu0 0.0
    %433 = vmatpush1.msra.mxu0 0.0
    %434 = vmatprep.subr.mxu0 0.0
    %435 = vmatpush1.msra.mxu0 0.0
    %436 = vmatprep.subr.mxu0 0.0
    %437 = vmatpush1.msra.mxu0 0.0
    %438 = vmatprep.subr.mxu0 0.0
    %439 = vmatpush1.msra.mxu0 0.0
    %440 = vmatprep.subr.mxu0 0.0
    %441 = vmatpush1.msra.mxu0 0.0
    %442 = vmatprep.subr.mxu0 0.0
    %443 = vmatpush1.msra.mxu0 0.0
    %444 = vmatprep.mubr.f32.mxu0 0.0
    %v445 = vand.u32 %v69, 4294901760
    %v446 = vsub.f32 %v69, %v445
    %v447 = vand.u32 %v446, 4294901760
    %448 = vmatmul.mubr.f32.gmra.mrb[0].mxu0 %v447
    %v449 = vpop.f32.mrb[0].mxu0
    %v450 = vadd.f32 %v355, %v449
    %v451 = vpop.f32.mrb[0].mxu0
    %452 = vmatprep.mubr.f32.mxu0 0.0
    %v453 = vand.u32 %v72, 4294901760
    %v454 = vsub.f32 %v72, %v453
    %v455 = vand.u32 %v454, 4294901760
    %456 = vmatmul.mubr.f32.gmra.mrb[0].mxu0 %v455
    %v457 = vpop.f32.mrb[0].mxu0
    %v458 = vadd.f32 %v362, %v457
    %v459 = vpop.f32.mrb[0].mxu0
    %460 = vmatprep.mubr.f32.mxu0 0.0
    %v461 = vand.u32 %v75, 4294901760
    %v462 = vsub.f32 %v75, %v461
    %v463 = vand.u32 %v462, 4294901760
    %464 = vmatmul.mubr.f32.gmra.mrb[0].mxu0 %v463
    %v465 = vpop.f32.mrb[0].mxu0
    %v466 = vadd.f32 %v369, %v465
    %v467 = vpop.f32.mrb[0].mxu0
    %468 = vmatprep.mubr.f32.mxu0 0.0
    %v469 = vand.u32 %v78, 4294901760
    %v470 = vsub.f32 %v78, %v469
    %v471 = vand.u32 %v470, 4294901760
    %472 = vmatmul.mubr.f32.gmra.mrb[0].mxu0 %v471
    %v473 = vpop.f32.mrb[0].mxu0
    %v474 = vadd.f32 %v376, %v473
    %v475 = vpop.f32.mrb[0].mxu0
    %476 = vdwg.mxu0
    %477 = vmatprep.subr.mxu0 0.0
    %v478 = vand.u32 %v82, 4294901760
    %v479 = vsub.f32 %v82, %v478
    %v480 = vand.u32 %v479, 4294901760
    %481 = vmatpush1.msra.mxu0 %v480
    %482 = vmatprep.subr.mxu0 0.0
    %483 = vmatpush1.msra.mxu0 0.0
    %484 = vmatprep.subr.mxu0 0.0
    %485 = vmatpush1.msra.mxu0 0.0
    %486 = vmatprep.subr.mxu0 0.0
    %487 = vmatpush1.msra.mxu0 0.0
    %488 = vmatprep.subr.mxu0 0.0
    %489 = vmatpush1.msra.mxu0 0.0
    %490 = vmatprep.subr.mxu0 0.0
    %491 = vmatpush1.msra.mxu0 0.0
    %492 = vmatprep.subr.mxu0 0.0
    %493 = vmatpush1.msra.mxu0 0.0
    %494 = vmatprep.subr.mxu0 0.0
    %495 = vmatpush1.msra.mxu0 0.0
    %496 = vmatprep.subr.mxu0 0.0
    %497 = vmatpush1.msra.mxu0 0.0
    %498 = vmatprep.subr.mxu0 0.0
    %499 = vmatpush1.msra.mxu0 0.0
    %500 = vmatprep.subr.mxu0 0.0
    %501 = vmatpush1.msra.mxu0 0.0
    %502 = vmatprep.subr.mxu0 0.0
    %503 = vmatpush1.msra.mxu0 0.0
    %504 = vmatprep.subr.mxu0 0.0
    %505 = vmatpush1.msra.mxu0 0.0
    %506 = vmatprep.subr.mxu0 0.0
    %507 = vmatpush1.msra.mxu0 0.0
    %508 = vmatprep.subr.mxu0 0.0
    %509 = vmatpush1.msra.mxu0 0.0
    %510 = vmatprep.subr.mxu0 0.0
    %511 = vmatpush1.msra.mxu0 0.0
    %512 = vmatprep.subr.mxu0 0.0
    %513 = vmatpush1.msra.mxu0 0.0
    %514 = vmatprep.subr.mxu0 0.0
    %515 = vmatpush1.msra.mxu0 0.0
    %516 = vmatprep.subr.mxu0 0.0
    %517 = vmatpush1.msra.mxu0 0.0
    %518 = vmatprep.subr.mxu0 0.0
    %519 = vmatpush1.msra.mxu0 0.0
    %520 = vmatprep.subr.mxu0 0.0
    %521 = vmatpush1.msra.mxu0 0.0
    %522 = vmatprep.subr.mxu0 0.0
    %523 = vmatpush1.msra.mxu0 0.0
    %524 = vmatprep.subr.mxu0 0.0
    %525 = vmatpush1.msra.mxu0 0.0
    %526 = vmatprep.subr.mxu0 0.0
    %527 = vmatpush1.msra.mxu0 0.0
    %528 = vmatprep.subr.mxu0 0.0
    %529 = vmatpush1.msra.mxu0 0.0
    %530 = vmatprep.subr.mxu0 0.0
    %531 = vmatpush1.msra.mxu0 0.0
    %532 = vmatprep.subr.mxu0 0.0
    %533 = vmatpush1.msra.mxu0 0.0
    %534 = vmatprep.subr.mxu0 0.0
    %535 = vmatpush1.msra.mxu0 0.0
    %536 = vmatprep.subr.mxu0 0.0
    %537 = vmatpush1.msra.mxu0 0.0
    %538 = vmatprep.subr.mxu0 0.0
    %539 = vmatpush1.msra.mxu0 0.0
    %540 = vmatprep.subr.mxu0 0.0
    %541 = vmatpush1.msra.mxu0 0.0
    %542 = vmatprep.subr.mxu0 0.0
    %543 = vmatpush1.msra.mxu0 0.0
    %544 = vmatprep.mubr.f32.mxu0 0.0
    %v545 = vand.u32 %v69, 4294901760
    %546 = vmatmul.mubr.f32.gmra.mrb[0].mxu0 %v545
    %v547 = vpop.f32.mrb[0].mxu0
    %v548 = vadd.f32 %v450, %v547
    %v549 = vpop.f32.mrb[0].mxu0
    %550 = vmatprep.mubr.f32.mxu0 0.0
    %v551 = vand.u32 %v72, 4294901760
    %552 = vmatmul.mubr.f32.gmra.mrb[0].mxu0 %v551
    %v553 = vpop.f32.mrb[0].mxu0
    %v554 = vadd.f32 %v458, %v553
    %v555 = vpop.f32.mrb[0].mxu0
    %556 = vmatprep.mubr.f32.mxu0 0.0
    %v557 = vand.u32 %v75, 4294901760
    %558 = vmatmul.mubr.f32.gmra.mrb[0].mxu0 %v557
    %v559 = vpop.f32.mrb[0].mxu0
    %v560 = vadd.f32 %v466, %v559
    %v561 = vpop.f32.mrb[0].mxu0
    %562 = vmatprep.mubr.f32.mxu0 0.0
    %v563 = vand.u32 %v78, 4294901760
    %564 = vmatmul.mubr.f32.gmra.mrb[0].mxu0 %v563
    %v565 = vpop.f32.mrb[0].mxu0
    %v566 = vadd.f32 %v474, %v565
    %v567 = vpop.f32.mrb[0].mxu0
    %568 = vdwg.mxu0
    %569 = vmatprep.subr.mxu0 0.0
    %v570 = vand.u32 %v82, 4294901760
    %571 = vmatpush1.msra.mxu0 %v570
    %572 = vmatprep.subr.mxu0 0.0
    %573 = vmatpush1.msra.mxu0 0.0
    %574 = vmatprep.subr.mxu0 0.0
    %575 = vmatpush1.msra.mxu0 0.0
    %576 = vmatprep.subr.mxu0 0.0
    %577 = vmatpush1.msra.mxu0 0.0
    %578 = vmatprep.subr.mxu0 0.0
    %579 = vmatpush1.msra.mxu0 0.0
    %580 = vmatprep.subr.mxu0 0.0
    %581 = vmatpush1.msra.mxu0 0.0
    %582 = vmatprep.subr.mxu0 0.0
    %583 = vmatpush1.msra.mxu0 0.0
    %584 = vmatprep.subr.mxu0 0.0
    %585 = vmatpush1.msra.mxu0 0.0
    %586 = vmatprep.subr.mxu0 0.0
    %587 = vmatpush1.msra.mxu0 0.0
    %588 = vmatprep.subr.mxu0 0.0
    %589 = vmatpush1.msra.mxu0 0.0
    %590 = vmatprep.subr.mxu0 0.0
    %591 = vmatpush1.msra.mxu0 0.0
    %592 = vmatprep.subr.mxu0 0.0
    %593 = vmatpush1.msra.mxu0 0.0
    %594 = vmatprep.subr.mxu0 0.0
    %595 = vmatpush1.msra.mxu0 0.0
    %596 = vmatprep.subr.mxu0 0.0
    %597 = vmatpush1.msra.mxu0 0.0
    %598 = vmatprep.subr.mxu0 0.0
    %599 = vmatpush1.msra.mxu0 0.0
    %600 = vmatprep.subr.mxu0 0.0
    %601 = vmatpush1.msra.mxu0 0.0
    %602 = vmatprep.subr.mxu0 0.0
    %603 = vmatpush1.msra.mxu0 0.0
    %604 = vmatprep.subr.mxu0 0.0
    %605 = vmatpush1.msra.mxu0 0.0
    %606 = vmatprep.subr.mxu0 0.0
    %607 = vmatpush1.msra.mxu0 0.0
    %608 = vmatprep.subr.mxu0 0.0
    %609 = vmatpush1.msra.mxu0 0.0
    %610 = vmatprep.subr.mxu0 0.0
    %611 = vmatpush1.msra.mxu0 0.0
    %612 = vmatprep.subr.mxu0 0.0
    %613 = vmatpush1.msra.mxu0 0.0
    %614 = vmatprep.subr.mxu0 0.0
    %615 = vmatpush1.msra.mxu0 0.0
    %616 = vmatprep.subr.mxu0 0.0
    %617 = vmatpush1.msra.mxu0 0.0
    %618 = vmatprep.subr.mxu0 0.0
    %619 = vmatpush1.msra.mxu0 0.0
    %620 = vmatprep.subr.mxu0 0.0
    %621 = vmatpush1.msra.mxu0 0.0
    %622 = vmatprep.subr.mxu0 0.0
    %623 = vmatpush1.msra.mxu0 0.0
    %624 = vmatprep.subr.mxu0 0.0
    %625 = vmatpush1.msra.mxu0 0.0
    %626 = vmatprep.subr.mxu0 0.0
    %627 = vmatpush1.msra.mxu0 0.0
    %628 = vmatprep.subr.mxu0 0.0
    %629 = vmatpush1.msra.mxu0 0.0
    %630 = vmatprep.subr.mxu0 0.0
    %631 = vmatpush1.msra.mxu0 0.0
    %632 = vmatprep.subr.mxu0 0.0
    %633 = vmatpush1.msra.mxu0 0.0
    %634 = vmatprep.mubr.f32.mxu0 0.0
    %v635 = vand.u32 %v69, 4294901760
    %636 = vmatmul.mubr.f32.gmra.mrb[0].mxu0 %v635
    %v637 = vpop.f32.mrb[0].mxu0
    %v638 = vadd.f32 %v548, %v637
    %v639 = vpop.f32.mrb[0].mxu0
    %640 = vmatprep.mubr.f32.mxu0 0.0
    %v641 = vand.u32 %v72, 4294901760
    %642 = vmatmul.mubr.f32.gmra.mrb[0].mxu0 %v641
    %v643 = vpop.f32.mrb[0].mxu0
    %v644 = vadd.f32 %v554, %v643
    %v645 = vpop.f32.mrb[0].mxu0
    %646 = vmatprep.mubr.f32.mxu0 0.0
    %v647 = vand.u32 %v75, 4294901760
    %648 = vmatmul.mubr.f32.gmra.mrb[0].mxu0 %v647
    %v649 = vpop.f32.mrb[0].mxu0
    %v650 = vadd.f32 %v560, %v649
    %v651 = vpop.f32.mrb[0].mxu0
    %652 = vmatprep.mubr.f32.mxu0 0.0
    %v653 = vand.u32 %v78, 4294901760
    %654 = vmatmul.mubr.f32.gmra.mrb[0].mxu0 %v653
    %v655 = vpop.f32.mrb[0].mxu0
    %v656 = vadd.f32 %v566, %v655
    %v657 = vpop.f32.mrb[0].mxu0
    %658 = vdwg.mxu0
    %v659 = vmax.f32 %v638, 0.0
    %v660 = vmax.f32 %v644, 0.0
    %v661 = vmax.f32 %v650, 0.0
    %v662 = vmax.f32 %v656, 0.0
    %v663 = vand.u32 2147483647, %v638
    %v664 = vand.u32 2147483647, %v644
    %v665 = vand.u32 2147483647, %v650
    %v666 = vand.u32 2147483647, %v656
    %v667 = vsub.f32 0.0, %v663
    %v668 = vsub.f32 0.0, %v664
    %v669 = vsub.f32 0.0, %v665
    %v670 = vsub.f32 0.0, %v666
    %v671 = vmul.f32 %v667, 1.442695
    %v672 = vpow.pop %v671
    %v673 = vmul.f32 %v668, 1.442695
    %v674 = vpow.pop %v673
    %v675 = vmul.f32 %v669, 1.442695
    %v676 = vpow.pop %v675
    %v677 = vmul.f32 %v670, 1.442695
    %v678 = vpow.pop %v677
    %v679 = vadd.f32 %v672, 1.0
    %v680 = vlog2.pop %v679
    %v681 = vmul.f32 %v680, 0.6931472
    %v682 = vmul.f32 -0.5, %v672
    %v683 = vadd.f32 %v682, 1.0
    %v684 = vmul.f32 %v683, %v672
    %v685 = vand.u32 2147483647, %v672
    %vm686 = vcmp.lt.f32.partialorder %v685, 0.0004427343
    %v687 = vsel %vm686, %v684, %v681
    %v688 = vadd.f32 %v674, 1.0
    %v689 = vlog2.pop %v688
    %v690 = vmul.f32 %v689, 0.6931472
    %v691 = vmul.f32 -0.5, %v674
    %v692 = vadd.f32 %v691, 1.0
    %v693 = vmul.f32 %v692, %v674
    %v694 = vand.u32 2147483647, %v674
    %vm695 = vcmp.lt.f32.partialorder %v694, 0.0004427343
    %v696 = vsel %vm695, %v693, %v690
    %v697 = vadd.f32 %v676, 1.0
    %v698 = vlog2.pop %v697
    %v699 = vmul.f32 %v698, 0.6931472
    %v700 = vmul.f32 -0.5, %v676
    %v701 = vadd.f32 %v700, 1.0
    %v702 = vmul.f32 %v701, %v676
    %v703 = vand.u32 2147483647, %v676
    %vm704 = vcmp.lt.f32.partialorder %v703, 0.0004427343
    %v705 = vsel %vm704, %v702, %v699
    %v706 = vadd.f32 %v678, 1.0
    %v707 = vlog2.pop %v706
    %v708 = vmul.f32 %v707, 0.6931472
    %v709 = vmul.f32 -0.5, %v678
    %v710 = vadd.f32 %v709, 1.0
    %v711 = vmul.f32 %v710, %v678
    %v712 = vand.u32 2147483647, %v678
    %vm713 = vcmp.lt.f32.partialorder %v712, 0.0004427343
    %v714 = vsel %vm713, %v711, %v708
    %v715 = vadd.f32 %v659, %v687
    %v716 = vadd.f32 %v660, %v696
    %v717 = vadd.f32 %v661, %v705
    %v718 = vadd.f32 %v662, %v714
    %v719 = vld [vmem:[%s2] sm:$0xff]
    %v720 = vld [vmem:[%s2 + $0x8] sm:$0xff]
    %v721 = vld [vmem:[%s2 + $0x10] sm:$0xff]
    %v722 = vld [vmem:[%s2 + $0x18] sm:$0x3f]
    %724 = vset.pattern.permute.xlu0 0
    %725 = vperm.xlu0 %724, %v31
    %v726 = vpop.permute.xlu0 %725
    %728 = vset.pattern.permute.xlu0 0
    %729 = vperm.xlu0 %728, %v32
    %v730 = vpop.permute.xlu0 %729
    %732 = vset.pattern.permute.xlu0 0
    %733 = vperm.xlu0 %732, %v33
    %v734 = vpop.permute.xlu0 %733
    %736 = vset.pattern.permute.xlu0 0
    %737 = vperm.xlu0 %736, %v34
    %v738 = vpop.permute.xlu0 %737
    %vm739 = vcmask 1041408
    %v740 = vrot.slane %v65, 6
    %v741 = vrot.slane %v726, 6
    %v742 = vsel %vm739, %v740, %v741
    %v743 = vrot.slane %v730, 6
    %v744 = vsel %vm739, %v741, %v743
    %v745 = vrot.slane %v734, 6
    %v746 = vsel %vm739, %v743, %v745
    %v747 = vrot.slane %v738, 6
    %v748 = vsel %vm739, %v745, %v747
    %vm753 = vcmask 244736
    %v755 = vsel %vm753, %v719, 0
    %v758 = vsel %vm753, %v720, 0
    %v761 = vsel %vm753, %v721, 0
    %v764 = vsel %vm753, %v722, 0
    %v767 = vsel %vm80, %v718, 0
    %769 = vmatprep.subr.mxu0 0.0
    %v770 = vand.u32 %v715, 4294901760
    %771 = vmatpush1.msra.mxu0 %v770
    %772 = vmatprep.subr.mxu0 0.0
    %v773 = vand.u32 %v716, 4294901760
    %774 = vmatpush1.msra.mxu0 %v773
    %775 = vmatprep.subr.mxu0 0.0
    %v776 = vand.u32 %v717, 4294901760
    %777 = vmatpush1.msra.mxu0 %v776
    %778 = vmatprep.subr.mxu0 0.0
    %v779 = vand.u32 %v767, 4294901760
    %780 = vmatpush1.msra.mxu0 %v779
    %781 = vmatprep.subr.mxu0 0.0
    %782 = vmatpush1.msra.mxu0 0.0
    %783 = vmatprep.subr.mxu0 0.0
    %784 = vmatpush1.msra.mxu0 0.0
    %785 = vmatprep.subr.mxu0 0.0
    %786 = vmatpush1.msra.mxu0 0.0
    %787 = vmatprep.subr.mxu0 0.0
    %788 = vmatpush1.msra.mxu0 0.0
    %789 = vmatprep.subr.mxu0 0.0
    %790 = vmatpush1.msra.mxu0 0.0
    %791 = vmatprep.subr.mxu0 0.0
    %792 = vmatpush1.msra.mxu0 0.0
    %793 = vmatprep.subr.mxu0 0.0
    %794 = vmatpush1.msra.mxu0 0.0
    %795 = vmatprep.subr.mxu0 0.0
    %796 = vmatpush1.msra.mxu0 0.0
    %797 = vmatprep.subr.mxu0 0.0
    %798 = vmatpush1.msra.mxu0 0.0
    %799 = vmatprep.subr.mxu0 0.0
    %800 = vmatpush1.msra.mxu0 0.0
    %801 = vmatprep.subr.mxu0 0.0
    %802 = vmatpush1.msra.mxu0 0.0
    %803 = vmatprep.subr.mxu0 0.0
    %804 = vmatpush1.msra.mxu0 0.0
    %805 = vmatprep.subr.mxu0 0.0
    %806 = vmatpush1.msra.mxu0 0.0
    %807 = vmatprep.subr.mxu0 0.0
    %808 = vmatpush1.msra.mxu0 0.0
    %809 = vmatprep.subr.mxu0 0.0
    %810 = vmatpush1.msra.mxu0 0.0
    %811 = vmatprep.subr.mxu0 0.0
    %812 = vmatpush1.msra.mxu0 0.0
    %813 = vmatprep.subr.mxu0 0.0
    %814 = vmatpush1.msra.mxu0 0.0
    %815 = vmatprep.subr.mxu0 0.0
    %816 = vmatpush1.msra.mxu0 0.0
    %817 = vmatprep.subr.mxu0 0.0
    %818 = vmatpush1.msra.mxu0 0.0
    %819 = vmatprep.subr.mxu0 0.0
    %820 = vmatpush1.msra.mxu0 0.0
    %821 = vmatprep.subr.mxu0 0.0
    %822 = vmatpush1.msra.mxu0 0.0
    %823 = vmatprep.subr.mxu0 0.0
    %824 = vmatpush1.msra.mxu0 0.0
    %825 = vmatprep.subr.mxu0 0.0
    %826 = vmatpush1.msra.mxu0 0.0
    %827 = vmatprep.subr.mxu0 0.0
    %828 = vmatpush1.msra.mxu0 0.0
    %829 = vmatprep.subr.mxu0 0.0
    %830 = vmatpush1.msra.mxu0 0.0
    %831 = vmatprep.subr.mxu0 0.0
    %832 = vmatpush1.msra.mxu0 0.0
    %833 = vmatprep.subr.mxu0 0.0
    %834 = vmatpush1.msra.mxu0 0.0
    %835 = vmatprep.subr.mxu0 0.0
    %836 = vmatpush1.msra.mxu0 0.0
    %837 = vmatprep.mubr.f32.mxu0 0.0
    %v838 = vand.u32 %v755, 4294901760
    %v839 = vsub.f32 %v755, %v838
    %v840 = vand.u32 %v839, 4294901760
    %v841 = vsub.f32 %v839, %v840
    %v842 = vand.u32 %v841, 4294901760
    %843 = vmatmul.mubr.f32.gmra.mrb[0].mxu0 %v842
    %v844 = vpop.f32.mrb[0].mxu0
    %v845 = vadd.f32 %v742, %v844
    %v846 = vpop.f32.mrb[0].mxu0
    %847 = vmatprep.mubr.f32.mxu0 0.0
    %v848 = vand.u32 %v758, 4294901760
    %v849 = vsub.f32 %v758, %v848
    %v850 = vand.u32 %v849, 4294901760
    %v851 = vsub.f32 %v849, %v850
    %v852 = vand.u32 %v851, 4294901760
    %853 = vmatmul.mubr.f32.gmra.mrb[0].mxu0 %v852
    %v854 = vpop.f32.mrb[0].mxu0
    %v855 = vadd.f32 %v744, %v854
    %v856 = vpop.f32.mrb[0].mxu0
    %857 = vmatprep.mubr.f32.mxu0 0.0
    %v858 = vand.u32 %v761, 4294901760
    %v859 = vsub.f32 %v761, %v858
    %v860 = vand.u32 %v859, 4294901760
    %v861 = vsub.f32 %v859, %v860
    %v862 = vand.u32 %v861, 4294901760
    %863 = vmatmul.mubr.f32.gmra.mrb[0].mxu0 %v862
    %v864 = vpop.f32.mrb[0].mxu0
    %v865 = vadd.f32 %v746, %v864
    %v866 = vpop.f32.mrb[0].mxu0
    %867 = vmatprep.mubr.f32.mxu0 0.0
    %v868 = vand.u32 %v764, 4294901760
    %v869 = vsub.f32 %v764, %v868
    %v870 = vand.u32 %v869, 4294901760
    %v871 = vsub.f32 %v869, %v870
    %v872 = vand.u32 %v871, 4294901760
    %873 = vmatmul.mubr.f32.gmra.mrb[0].mxu0 %v872
    %v874 = vpop.f32.mrb[0].mxu0
    %v875 = vadd.f32 %v748, %v874
    %v876 = vpop.f32.mrb[0].mxu0
    %877 = vdwg.mxu0
    %878 = vmatprep.subr.mxu0 0.0
    %v879 = vand.u32 %v715, 4294901760
    %v880 = vsub.f32 %v715, %v879
    %v881 = vand.u32 %v880, 4294901760
    %v882 = vsub.f32 %v880, %v881
    %v883 = vand.u32 %v882, 4294901760
    %884 = vmatpush1.msra.mxu0 %v883
    %885 = vmatprep.subr.mxu0 0.0
    %v886 = vand.u32 %v716, 4294901760
    %v887 = vsub.f32 %v716, %v886
    %v888 = vand.u32 %v887, 4294901760
    %v889 = vsub.f32 %v887, %v888
    %v890 = vand.u32 %v889, 4294901760
    %891 = vmatpush1.msra.mxu0 %v890
    %892 = vmatprep.subr.mxu0 0.0
    %v893 = vand.u32 %v717, 4294901760
    %v894 = vsub.f32 %v717, %v893
    %v895 = vand.u32 %v894, 4294901760
    %v896 = vsub.f32 %v894, %v895
    %v897 = vand.u32 %v896, 4294901760
    %898 = vmatpush1.msra.mxu0 %v897
    %899 = vmatprep.subr.mxu0 0.0
    %v900 = vand.u32 %v767, 4294901760
    %v901 = vsub.f32 %v767, %v900
    %v902 = vand.u32 %v901, 4294901760
    %v903 = vsub.f32 %v901, %v902
    %v904 = vand.u32 %v903, 4294901760
    %905 = vmatpush1.msra.mxu0 %v904
    %906 = vmatprep.subr.mxu0 0.0
    %907 = vmatpush1.msra.mxu0 0.0
    %908 = vmatprep.subr.mxu0 0.0
    %909 = vmatpush1.msra.mxu0 0.0
    %910 = vmatprep.subr.mxu0 0.0
    %911 = vmatpush1.msra.mxu0 0.0
    %912 = vmatprep.subr.mxu0 0.0
    %913 = vmatpush1.msra.mxu0 0.0
    %914 = vmatprep.subr.mxu0 0.0
    %915 = vmatpush1.msra.mxu0 0.0
    %916 = vmatprep.subr.mxu0 0.0
    %917 = vmatpush1.msra.mxu0 0.0
    %918 = vmatprep.subr.mxu0 0.0
    %919 = vmatpush1.msra.mxu0 0.0
    %920 = vmatprep.subr.mxu0 0.0
    %921 = vmatpush1.msra.mxu0 0.0
    %922 = vmatprep.subr.mxu0 0.0
    %923 = vmatpush1.msra.mxu0 0.0
    %924 = vmatprep.subr.mxu0 0.0
    %925 = vmatpush1.msra.mxu0 0.0
    %926 = vmatprep.subr.mxu0 0.0
    %927 = vmatpush1.msra.mxu0 0.0
    %928 = vmatprep.subr.mxu0 0.0
    %929 = vmatpush1.msra.mxu0 0.0
    %930 = vmatprep.subr.mxu0 0.0
    %931 = vmatpush1.msra.mxu0 0.0
    %932 = vmatprep.subr.mxu0 0.0
    %933 = vmatpush1.msra.mxu0 0.0
    %934 = vmatprep.subr.mxu0 0.0
    %935 = vmatpush1.msra.mxu0 0.0
    %936 = vmatprep.subr.mxu0 0.0
    %937 = vmatpush1.msra.mxu0 0.0
    %938 = vmatprep.subr.mxu0 0.0
    %939 = vmatpush1.msra.mxu0 0.0
    %940 = vmatprep.subr.mxu0 0.0
    %941 = vmatpush1.msra.mxu0 0.0
    %942 = vmatprep.subr.mxu0 0.0
    %943 = vmatpush1.msra.mxu0 0.0
    %944 = vmatprep.subr.mxu0 0.0
    %945 = vmatpush1.msra.mxu0 0.0
    %946 = vmatprep.subr.mxu0 0.0
    %947 = vmatpush1.msra.mxu0 0.0
    %948 = vmatprep.subr.mxu0 0.0
    %949 = vmatpush1.msra.mxu0 0.0
    %950 = vmatprep.subr.mxu0 0.0
    %951 = vmatpush1.msra.mxu0 0.0
    %952 = vmatprep.subr.mxu0 0.0
    %953 = vmatpush1.msra.mxu0 0.0
    %954 = vmatprep.subr.mxu0 0.0
    %955 = vmatpush1.msra.mxu0 0.0
    %956 = vmatprep.subr.mxu0 0.0
    %957 = vmatpush1.msra.mxu0 0.0
    %958 = vmatprep.subr.mxu0 0.0
    %959 = vmatpush1.msra.mxu0 0.0
    %960 = vmatprep.subr.mxu0 0.0
    %961 = vmatpush1.msra.mxu0 0.0
    %962 = vmatprep.mubr.f32.mxu0 0.0
    %v963 = vand.u32 %v755, 4294901760
    %964 = vmatmul.mubr.f32.gmra.mrb[0].mxu0 %v963
    %v965 = vpop.f32.mrb[0].mxu0
    %v966 = vadd.f32 %v845, %v965
    %v967 = vpop.f32.mrb[0].mxu0
    %968 = vmatprep.mubr.f32.mxu0 0.0
    %v969 = vand.u32 %v758, 4294901760
    %970 = vmatmul.mubr.f32.gmra.mrb[0].mxu0 %v969
    %v971 = vpop.f32.mrb[0].mxu0
    %v972 = vadd.f32 %v855, %v971
    %v973 = vpop.f32.mrb[0].mxu0
    %974 = vmatprep.mubr.f32.mxu0 0.0
    %v975 = vand.u32 %v761, 4294901760
    %976 = vmatmul.mubr.f32.gmra.mrb[0].mxu0 %v975
    %v977 = vpop.f32.mrb[0].mxu0
    %v978 = vadd.f32 %v865, %v977
    %v979 = vpop.f32.mrb[0].mxu0
    %980 = vmatprep.mubr.f32.mxu0 0.0
    %v981 = vand.u32 %v764, 4294901760
    %982 = vmatmul.mubr.f32.gmra.mrb[0].mxu0 %v981
    %v983 = vpop.f32.mrb[0].mxu0
    %v984 = vadd.f32 %v875, %v983
    %v985 = vpop.f32.mrb[0].mxu0
    %986 = vdwg.mxu0
    %987 = vmatprep.subr.mxu0 0.0
    %v988 = vand.u32 %v715, 4294901760
    %v989 = vsub.f32 %v715, %v988
    %990 = vmatpush1.msra.mxu0 %v989
    %991 = vmatprep.subr.mxu0 0.0
    %v992 = vand.u32 %v716, 4294901760
    %v993 = vsub.f32 %v716, %v992
    %994 = vmatpush1.msra.mxu0 %v993
    %995 = vmatprep.subr.mxu0 0.0
    %v996 = vand.u32 %v717, 4294901760
    %v997 = vsub.f32 %v717, %v996
    %998 = vmatpush1.msra.mxu0 %v997
    %999 = vmatprep.subr.mxu0 0.0
    %v1000 = vand.u32 %v767, 4294901760
    %v1001 = vsub.f32 %v767, %v1000
    %1002 = vmatpush1.msra.mxu0 %v1001
    %1003 = vmatprep.subr.mxu0 0.0
    %1004 = vmatpush1.msra.mxu0 0.0
    %1005 = vmatprep.subr.mxu0 0.0
    %1006 = vmatpush1.msra.mxu0 0.0
    %1007 = vmatprep.subr.mxu0 0.0
    %1008 = vmatpush1.msra.mxu0 0.0
    %1009 = vmatprep.subr.mxu0 0.0
    %1010 = vmatpush1.msra.mxu0 0.0
    %1011 = vmatprep.subr.mxu0 0.0
    %1012 = vmatpush1.msra.mxu0 0.0
    %1013 = vmatprep.subr.mxu0 0.0
    %1014 = vmatpush1.msra.mxu0 0.0
    %1015 = vmatprep.subr.mxu0 0.0
    %1016 = vmatpush1.msra.mxu0 0.0
    %1017 = vmatprep.subr.mxu0 0.0
    %1018 = vmatpush1.msra.mxu0 0.0
    %1019 = vmatprep.subr.mxu0 0.0
    %1020 = vmatpush1.msra.mxu0 0.0
    %1021 = vmatprep.subr.mxu0 0.0
    %1022 = vmatpush1.msra.mxu0 0.0
    %1023 = vmatprep.subr.mxu0 0.0
    %1024 = vmatpush1.msra.mxu0 0.0
    %1025 = vmatprep.subr.mxu0 0.0
    %1026 = vmatpush1.msra.mxu0 0.0
    %1027 = vmatprep.subr.mxu0 0.0
    %1028 = vmatpush1.msra.mxu0 0.0
    %1029 = vmatprep.subr.mxu0 0.0
    %1030 = vmatpush1.msra.mxu0 0.0
    %1031 = vmatprep.subr.mxu0 0.0
    %1032 = vmatpush1.msra.mxu0 0.0
    %1033 = vmatprep.subr.mxu0 0.0
    %1034 = vmatpush1.msra.mxu0 0.0
    %1035 = vmatprep.subr.mxu0 0.0
    %1036 = vmatpush1.msra.mxu0 0.0
    %1037 = vmatprep.subr.mxu0 0.0
    %1038 = vmatpush1.msra.mxu0 0.0
    %1039 = vmatprep.subr.mxu0 0.0
    %1040 = vmatpush1.msra.mxu0 0.0
    %1041 = vmatprep.subr.mxu0 0.0
    %1042 = vmatpush1.msra.mxu0 0.0
    %1043 = vmatprep.subr.mxu0 0.0
    %1044 = vmatpush1.msra.mxu0 0.0
    %1045 = vmatprep.subr.mxu0 0.0
    %1046 = vmatpush1.msra.mxu0 0.0
    %1047 = vmatprep.subr.mxu0 0.0
    %1048 = vmatpush1.msra.mxu0 0.0
    %1049 = vmatprep.subr.mxu0 0.0
    %1050 = vmatpush1.msra.mxu0 0.0
    %1051 = vmatprep.subr.mxu0 0.0
    %1052 = vmatpush1.msra.mxu0 0.0
    %1053 = vmatprep.subr.mxu0 0.0
    %1054 = vmatpush1.msra.mxu0 0.0
    %1055 = vmatprep.subr.mxu0 0.0
    %1056 = vmatpush1.msra.mxu0 0.0
    %1057 = vmatprep.subr.mxu0 0.0
    %1058 = vmatpush1.msra.mxu0 0.0
    %1059 = vmatprep.mubr.f32.mxu0 0.0
    %v1060 = vand.u32 %v755, 4294901760
    %v1061 = vsub.f32 %v755, %v1060
    %1062 = vmatmul.mubr.f32.gmra.mrb[0].mxu0 %v1061
    %v1063 = vpop.f32.mrb[0].mxu0
    %v1064 = vadd.f32 %v966, %v1063
    %v1065 = vpop.f32.mrb[0].mxu0
    %1066 = vmatprep.mubr.f32.mxu0 0.0
    %v1067 = vand.u32 %v758, 4294901760
    %v1068 = vsub.f32 %v758, %v1067
    %1069 = vmatmul.mubr.f32.gmra.mrb[0].mxu0 %v1068
    %v1070 = vpop.f32.mrb[0].mxu0
    %v1071 = vadd.f32 %v972, %v1070
    %v1072 = vpop.f32.mrb[0].mxu0
    %1073 = vmatprep.mubr.f32.mxu0 0.0
    %v1074 = vand.u32 %v761, 4294901760
    %v1075 = vsub.f32 %v761, %v1074
    %1076 = vmatmul.mubr.f32.gmra.mrb[0].mxu0 %v1075
    %v1077 = vpop.f32.mrb[0].mxu0
    %v1078 = vadd.f32 %v978, %v1077
    %v1079 = vpop.f32.mrb[0].mxu0
    %1080 = vmatprep.mubr.f32.mxu0 0.0
    %v1081 = vand.u32 %v764, 4294901760
    %v1082 = vsub.f32 %v764, %v1081
    %1083 = vmatmul.mubr.f32.gmra.mrb[0].mxu0 %v1082
    %v1084 = vpop.f32.mrb[0].mxu0
    %v1085 = vadd.f32 %v984, %v1084
    %v1086 = vpop.f32.mrb[0].mxu0
    %1087 = vdwg.mxu0
    %1088 = vmatprep.subr.mxu0 0.0
    %v1089 = vand.u32 %v715, 4294901760
    %1090 = vmatpush1.msra.mxu0 %v1089
    %1091 = vmatprep.subr.mxu0 0.0
    %v1092 = vand.u32 %v716, 4294901760
    %1093 = vmatpush1.msra.mxu0 %v1092
    %1094 = vmatprep.subr.mxu0 0.0
    %v1095 = vand.u32 %v717, 4294901760
    %1096 = vmatpush1.msra.mxu0 %v1095
    %1097 = vmatprep.subr.mxu0 0.0
    %v1098 = vand.u32 %v767, 4294901760
    %1099 = vmatpush1.msra.mxu0 %v1098
    %1100 = vmatprep.subr.mxu0 0.0
    %1101 = vmatpush1.msra.mxu0 0.0
    %1102 = vmatprep.subr.mxu0 0.0
    %1103 = vmatpush1.msra.mxu0 0.0
    %1104 = vmatprep.subr.mxu0 0.0
    %1105 = vmatpush1.msra.mxu0 0.0
    %1106 = vmatprep.subr.mxu0 0.0
    %1107 = vmatpush1.msra.mxu0 0.0
    %1108 = vmatprep.subr.mxu0 0.0
    %1109 = vmatpush1.msra.mxu0 0.0
    %1110 = vmatprep.subr.mxu0 0.0
    %1111 = vmatpush1.msra.mxu0 0.0
    %1112 = vmatprep.subr.mxu0 0.0
    %1113 = vmatpush1.msra.mxu0 0.0
    %1114 = vmatprep.subr.mxu0 0.0
    %1115 = vmatpush1.msra.mxu0 0.0
    %1116 = vmatprep.subr.mxu0 0.0
    %1117 = vmatpush1.msra.mxu0 0.0
    %1118 = vmatprep.subr.mxu0 0.0
    %1119 = vmatpush1.msra.mxu0 0.0
    %1120 = vmatprep.subr.mxu0 0.0
    %1121 = vmatpush1.msra.mxu0 0.0
    %1122 = vmatprep.subr.mxu0 0.0
    %1123 = vmatpush1.msra.mxu0 0.0
    %1124 = vmatprep.subr.mxu0 0.0
    %1125 = vmatpush1.msra.mxu0 0.0
    %1126 = vmatprep.subr.mxu0 0.0
    %1127 = vmatpush1.msra.mxu0 0.0
    %1128 = vmatprep.subr.mxu0 0.0
    %1129 = vmatpush1.msra.mxu0 0.0
    %1130 = vmatprep.subr.mxu0 0.0
    %1131 = vmatpush1.msra.mxu0 0.0
    %1132 = vmatprep.subr.mxu0 0.0
    %1133 = vmatpush1.msra.mxu0 0.0
    %1134 = vmatprep.subr.mxu0 0.0
    %1135 = vmatpush1.msra.mxu0 0.0
    %1136 = vmatprep.subr.mxu0 0.0
    %1137 = vmatpush1.msra.mxu0 0.0
    %1138 = vmatprep.subr.mxu0 0.0
    %1139 = vmatpush1.msra.mxu0 0.0
    %1140 = vmatprep.subr.mxu0 0.0
    %1141 = vmatpush1.msra.mxu0 0.0
    %1142 = vmatprep.subr.mxu0 0.0
    %1143 = vmatpush1.msra.mxu0 0.0
    %1144 = vmatprep.subr.mxu0 0.0
    %1145 = vmatpush1.msra.mxu0 0.0
    %1146 = vmatprep.subr.mxu0 0.0
    %1147 = vmatpush1.msra.mxu0 0.0
    %1148 = vmatprep.subr.mxu0 0.0
    %1149 = vmatpush1.msra.mxu0 0.0
    %1150 = vmatprep.subr.mxu0 0.0
    %1151 = vmatpush1.msra.mxu0 0.0
    %1152 = vmatprep.subr.mxu0 0.0
    %1153 = vmatpush1.msra.mxu0 0.0
    %1154 = vmatprep.subr.mxu0 0.0
    %1155 = vmatpush1.msra.mxu0 0.0
    %1156 = vmatprep.mubr.f32.mxu0 0.0
    %v1157 = vand.u32 %v755, 4294901760
    %v1158 = vsub.f32 %v755, %v1157
    %v1159 = vand.u32 %v1158, 4294901760
    %1160 = vmatmul.mubr.f32.gmra.mrb[0].mxu0 %v1159
    %v1161 = vpop.f32.mrb[0].mxu0
    %v1162 = vadd.f32 %v1064, %v1161
    %v1163 = vpop.f32.mrb[0].mxu0
    %1164 = vmatprep.mubr.f32.mxu0 0.0
    %v1165 = vand.u32 %v758, 4294901760
    %v1166 = vsub.f32 %v758, %v1165
    %v1167 = vand.u32 %v1166, 4294901760
    %1168 = vmatmul.mubr.f32.gmra.mrb[0].mxu0 %v1167
    %v1169 = vpop.f32.mrb[0].mxu0
    %v1170 = vadd.f32 %v1071, %v1169
    %v1171 = vpop.f32.mrb[0].mxu0
    %1172 = vmatprep.mubr.f32.mxu0 0.0
    %v1173 = vand.u32 %v761, 4294901760
    %v1174 = vsub.f32 %v761, %v1173
    %v1175 = vand.u32 %v1174, 4294901760
    %1176 = vmatmul.mubr.f32.gmra.mrb[0].mxu0 %v1175
    %v1177 = vpop.f32.mrb[0].mxu0
    %v1178 = vadd.f32 %v1078, %v1177
    %v1179 = vpop.f32.mrb[0].mxu0
    %1180 = vmatprep.mubr.f32.mxu0 0.0
    %v1181 = vand.u32 %v764, 4294901760
    %v1182 = vsub.f32 %v764, %v1181
    %v1183 = vand.u32 %v1182, 4294901760
    %1184 = vmatmul.mubr.f32.gmra.mrb[0].mxu0 %v1183
    %v1185 = vpop.f32.mrb[0].mxu0
    %v1186 = vadd.f32 %v1085, %v1185
    %v1187 = vpop.f32.mrb[0].mxu0
    %1188 = vdwg.mxu0
    %1189 = vmatprep.subr.mxu0 0.0
    %v1190 = vand.u32 %v715, 4294901760
    %v1191 = vsub.f32 %v715, %v1190
    %v1192 = vand.u32 %v1191, 4294901760
    %1193 = vmatpush1.msra.mxu0 %v1192
    %1194 = vmatprep.subr.mxu0 0.0
    %v1195 = vand.u32 %v716, 4294901760
    %v1196 = vsub.f32 %v716, %v1195
    %v1197 = vand.u32 %v1196, 4294901760
    %1198 = vmatpush1.msra.mxu0 %v1197
    %1199 = vmatprep.subr.mxu0 0.0
    %v1200 = vand.u32 %v717, 4294901760
    %v1201 = vsub.f32 %v717, %v1200
    %v1202 = vand.u32 %v1201, 4294901760
    %1203 = vmatpush1.msra.mxu0 %v1202
    %1204 = vmatprep.subr.mxu0 0.0
    %v1205 = vand.u32 %v767, 4294901760
    %v1206 = vsub.f32 %v767, %v1205
    %v1207 = vand.u32 %v1206, 4294901760
    %1208 = vmatpush1.msra.mxu0 %v1207
    %1209 = vmatprep.subr.mxu0 0.0
    %1210 = vmatpush1.msra.mxu0 0.0
    %1211 = vmatprep.subr.mxu0 0.0
    %1212 = vmatpush1.msra.mxu0 0.0
    %1213 = vmatprep.subr.mxu0 0.0
    %1214 = vmatpush1.msra.mxu0 0.0
    %1215 = vmatprep.subr.mxu0 0.0
    %1216 = vmatpush1.msra.mxu0 0.0
    %1217 = vmatprep.subr.mxu0 0.0
    %1218 = vmatpush1.msra.mxu0 0.0
    %1219 = vmatprep.subr.mxu0 0.0
    %1220 = vmatpush1.msra.mxu0 0.0
    %1221 = vmatprep.subr.mxu0 0.0
    %1222 = vmatpush1.msra.mxu0 0.0
    %1223 = vmatprep.subr.mxu0 0.0
    %1224 = vmatpush1.msra.mxu0 0.0
    %1225 = vmatprep.subr.mxu0 0.0
    %1226 = vmatpush1.msra.mxu0 0.0
    %1227 = vmatprep.subr.mxu0 0.0
    %1228 = vmatpush1.msra.mxu0 0.0
    %1229 = vmatprep.subr.mxu0 0.0
    %1230 = vmatpush1.msra.mxu0 0.0
    %1231 = vmatprep.subr.mxu0 0.0
    %1232 = vmatpush1.msra.mxu0 0.0
    %1233 = vmatprep.subr.mxu0 0.0
    %1234 = vmatpush1.msra.mxu0 0.0
    %1235 = vmatprep.subr.mxu0 0.0
    %1236 = vmatpush1.msra.mxu0 0.0
    %1237 = vmatprep.subr.mxu0 0.0
    %1238 = vmatpush1.msra.mxu0 0.0
    %1239 = vmatprep.subr.mxu0 0.0
    %1240 = vmatpush1.msra.mxu0 0.0
    %1241 = vmatprep.subr.mxu0 0.0
    %1242 = vmatpush1.msra.mxu0 0.0
    %1243 = vmatprep.subr.mxu0 0.0
    %1244 = vmatpush1.msra.mxu0 0.0
    %1245 = vmatprep.subr.mxu0 0.0
    %1246 = vmatpush1.msra.mxu0 0.0
    %1247 = vmatprep.subr.mxu0 0.0
    %1248 = vmatpush1.msra.mxu0 0.0
    %1249 = vmatprep.subr.mxu0 0.0
    %1250 = vmatpush1.msra.mxu0 0.0
    %1251 = vmatprep.subr.mxu0 0.0
    %1252 = vmatpush1.msra.mxu0 0.0
    %1253 = vmatprep.subr.mxu0 0.0
    %1254 = vmatpush1.msra.mxu0 0.0
    %1255 = vmatprep.subr.mxu0 0.0
    %1256 = vmatpush1.msra.mxu0 0.0
    %1257 = vmatprep.subr.mxu0 0.0
    %1258 = vmatpush1.msra.mxu0 0.0
    %1259 = vmatprep.subr.mxu0 0.0
    %1260 = vmatpush1.msra.mxu0 0.0
    %1261 = vmatprep.subr.mxu0 0.0
    %1262 = vmatpush1.msra.mxu0 0.0
    %1263 = vmatprep.subr.mxu0 0.0
    %1264 = vmatpush1.msra.mxu0 0.0
    %1265 = vmatprep.mubr.f32.mxu0 0.0
    %v1266 = vand.u32 %v755, 4294901760
    %1267 = vmatmul.mubr.f32.gmra.mrb[0].mxu0 %v1266
    %v1268 = vpop.f32.mrb[0].mxu0
    %v1269 = vadd.f32 %v1162, %v1268
    %v1270 = vpop.f32.mrb[0].mxu0
    %1271 = vmatprep.mubr.f32.mxu0 0.0
    %v1272 = vand.u32 %v758, 4294901760
    %1273 = vmatmul.mubr.f32.gmra.mrb[0].mxu0 %v1272
    %v1274 = vpop.f32.mrb[0].mxu0
    %v1275 = vadd.f32 %v1170, %v1274
    %v1276 = vpop.f32.mrb[0].mxu0
    %1277 = vmatprep.mubr.f32.mxu0 0.0
    %v1278 = vand.u32 %v761, 4294901760
    %1279 = vmatmul.mubr.f32.gmra.mrb[0].mxu0 %v1278
    %v1280 = vpop.f32.mrb[0].mxu0
    %v1281 = vadd.f32 %v1178, %v1280
    %v1282 = vpop.f32.mrb[0].mxu0
    %1283 = vmatprep.mubr.f32.mxu0 0.0
    %v1284 = vand.u32 %v764, 4294901760
    %1285 = vmatmul.mubr.f32.gmra.mrb[0].mxu0 %v1284
    %v1286 = vpop.f32.mrb[0].mxu0
    %v1287 = vadd.f32 %v1186, %v1286
    %v1288 = vpop.f32.mrb[0].mxu0
    %1289 = vdwg.mxu0
    %1290 = vmatprep.subr.mxu0 0.0
    %v1291 = vand.u32 %v715, 4294901760
    %1292 = vmatpush1.msra.mxu0 %v1291
    %1293 = vmatprep.subr.mxu0 0.0
    %v1294 = vand.u32 %v716, 4294901760
    %1295 = vmatpush1.msra.mxu0 %v1294
    %1296 = vmatprep.subr.mxu0 0.0
    %v1297 = vand.u32 %v717, 4294901760
    %1298 = vmatpush1.msra.mxu0 %v1297
    %1299 = vmatprep.subr.mxu0 0.0
    %v1300 = vand.u32 %v767, 4294901760
    %1301 = vmatpush1.msra.mxu0 %v1300
    %1302 = vmatprep.subr.mxu0 0.0
    %1303 = vmatpush1.msra.mxu0 0.0
    %1304 = vmatprep.subr.mxu0 0.0
    %1305 = vmatpush1.msra.mxu0 0.0
    %1306 = vmatprep.subr.mxu0 0.0
    %1307 = vmatpush1.msra.mxu0 0.0
    %1308 = vmatprep.subr.mxu0 0.0
    %1309 = vmatpush1.msra.mxu0 0.0
    %1310 = vmatprep.subr.mxu0 0.0
    %1311 = vmatpush1.msra.mxu0 0.0
    %1312 = vmatprep.subr.mxu0 0.0
    %1313 = vmatpush1.msra.mxu0 0.0
    %1314 = vmatprep.subr.mxu0 0.0
    %1315 = vmatpush1.msra.mxu0 0.0
    %1316 = vmatprep.subr.mxu0 0.0
    %1317 = vmatpush1.msra.mxu0 0.0
    %1318 = vmatprep.subr.mxu0 0.0
    %1319 = vmatpush1.msra.mxu0 0.0
    %1320 = vmatprep.subr.mxu0 0.0
    %1321 = vmatpush1.msra.mxu0 0.0
    %1322 = vmatprep.subr.mxu0 0.0
    %1323 = vmatpush1.msra.mxu0 0.0
    %1324 = vmatprep.subr.mxu0 0.0
    %1325 = vmatpush1.msra.mxu0 0.0
    %1326 = vmatprep.subr.mxu0 0.0
    %1327 = vmatpush1.msra.mxu0 0.0
    %1328 = vmatprep.subr.mxu0 0.0
    %1329 = vmatpush1.msra.mxu0 0.0
    %1330 = vmatprep.subr.mxu0 0.0
    %1331 = vmatpush1.msra.mxu0 0.0
    %1332 = vmatprep.subr.mxu0 0.0
    %1333 = vmatpush1.msra.mxu0 0.0
    %1334 = vmatprep.subr.mxu0 0.0
    %1335 = vmatpush1.msra.mxu0 0.0
    %1336 = vmatprep.subr.mxu0 0.0
    %1337 = vmatpush1.msra.mxu0 0.0
    %1338 = vmatprep.subr.mxu0 0.0
    %1339 = vmatpush1.msra.mxu0 0.0
    %1340 = vmatprep.subr.mxu0 0.0
    %1341 = vmatpush1.msra.mxu0 0.0
    %1342 = vmatprep.subr.mxu0 0.0
    %1343 = vmatpush1.msra.mxu0 0.0
    %1344 = vmatprep.subr.mxu0 0.0
    %1345 = vmatpush1.msra.mxu0 0.0
    %1346 = vmatprep.subr.mxu0 0.0
    %1347 = vmatpush1.msra.mxu0 0.0
    %1348 = vmatprep.subr.mxu0 0.0
    %1349 = vmatpush1.msra.mxu0 0.0
    %1350 = vmatprep.subr.mxu0 0.0
    %1351 = vmatpush1.msra.mxu0 0.0
    %1352 = vmatprep.subr.mxu0 0.0
    %1353 = vmatpush1.msra.mxu0 0.0
    %1354 = vmatprep.subr.mxu0 0.0
    %1355 = vmatpush1.msra.mxu0 0.0
    %1356 = vmatprep.subr.mxu0 0.0
    %1357 = vmatpush1.msra.mxu0 0.0
    %1358 = vmatprep.mubr.f32.mxu0 0.0
    %v1359 = vand.u32 %v755, 4294901760
    %1360 = vmatmul.mubr.f32.gmra.mrb[0].mxu0 %v1359
    %v1361 = vpop.f32.mrb[0].mxu0
    %v1362 = vadd.f32 %v1269, %v1361
    %v1363 = vpop.f32.mrb[0].mxu0
    %1364 = vmatprep.mubr.f32.mxu0 0.0
    %v1365 = vand.u32 %v758, 4294901760
    %1366 = vmatmul.mubr.f32.gmra.mrb[0].mxu0 %v1365
    %v1367 = vpop.f32.mrb[0].mxu0
    %v1368 = vadd.f32 %v1275, %v1367
    %v1369 = vpop.f32.mrb[0].mxu0
    %1370 = vmatprep.mubr.f32.mxu0 0.0
    %v1371 = vand.u32 %v761, 4294901760
    %1372 = vmatmul.mubr.f32.gmra.mrb[0].mxu0 %v1371
    %v1373 = vpop.f32.mrb[0].mxu0
    %v1374 = vadd.f32 %v1281, %v1373
    %v1375 = vpop.f32.mrb[0].mxu0
    %1376 = vmatprep.mubr.f32.mxu0 0.0
    %v1377 = vand.u32 %v764, 4294901760
    %1378 = vmatmul.mubr.f32.gmra.mrb[0].mxu0 %v1377
    %v1379 = vpop.f32.mrb[0].mxu0
    %v1380 = vadd.f32 %v1287, %v1379
    %v1381 = vpop.f32.mrb[0].mxu0
    %1382 = vdwg.mxu0
    %v1383 = vmax.f32 %v1362, 0.0
    %v1384 = vmax.f32 %v1368, 0.0
    %v1385 = vmax.f32 %v1374, 0.0
    %v1386 = vmax.f32 %v1380, 0.0
    %v1387 = vand.u32 2147483647, %v1362
    %v1388 = vand.u32 2147483647, %v1368
    %v1389 = vand.u32 2147483647, %v1374
    %v1390 = vand.u32 2147483647, %v1380
    %v1391 = vsub.f32 0.0, %v1387
    %v1392 = vsub.f32 0.0, %v1388
    %v1393 = vsub.f32 0.0, %v1389
    %v1394 = vsub.f32 0.0, %v1390
    %v1395 = vmul.f32 %v1391, 1.442695
    %v1396 = vpow.pop %v1395
    %v1397 = vmul.f32 %v1392, 1.442695
    %v1398 = vpow.pop %v1397
    %v1399 = vmul.f32 %v1393, 1.442695
    %v1400 = vpow.pop %v1399
    %v1401 = vmul.f32 %v1394, 1.442695
    %v1402 = vpow.pop %v1401
    %v1403 = vadd.f32 %v1396, 1.0
    %v1404 = vlog2.pop %v1403
    %v1405 = vmul.f32 %v1404, 0.6931472
    %v1406 = vmul.f32 -0.5, %v1396
    %v1407 = vadd.f32 %v1406, 1.0
    %v1408 = vmul.f32 %v1407, %v1396
    %v1409 = vand.u32 2147483647, %v1396
    %vm1410 = vcmp.lt.f32.partialorder %v1409, 0.0004427343
    %v1411 = vsel %vm1410, %v1408, %v1405
    %v1412 = vadd.f32 %v1398, 1.0
    %v1413 = vlog2.pop %v1412
    %v1414 = vmul.f32 %v1413, 0.6931472
    %v1415 = vmul.f32 -0.5, %v1398
    %v1416 = vadd.f32 %v1415, 1.0
    %v1417 = vmul.f32 %v1416, %v1398
    %v1418 = vand.u32 2147483647, %v1398
    %vm1419 = vcmp.lt.f32.partialorder %v1418, 0.0004427343
    %v1420 = vsel %vm1419, %v1417, %v1414
    %v1421 = vadd.f32 %v1400, 1.0
    %v1422 = vlog2.pop %v1421
    %v1423 = vmul.f32 %v1422, 0.6931472
    %v1424 = vmul.f32 -0.5, %v1400
    %v1425 = vadd.f32 %v1424, 1.0
    %v1426 = vmul.f32 %v1425, %v1400
    %v1427 = vand.u32 2147483647, %v1400
    %vm1428 = vcmp.lt.f32.partialorder %v1427, 0.0004427343
    %v1429 = vsel %vm1428, %v1426, %v1423
    %v1430 = vadd.f32 %v1402, 1.0
    %v1431 = vlog2.pop %v1430
    %v1432 = vmul.f32 %v1431, 0.6931472
    %v1433 = vmul.f32 -0.5, %v1402
    %v1434 = vadd.f32 %v1433, 1.0
    %v1435 = vmul.f32 %v1434, %v1402
    %v1436 = vand.u32 2147483647, %v1402
    %vm1437 = vcmp.lt.f32.partialorder %v1436, 0.0004427343
    %v1438 = vsel %vm1437, %v1435, %v1432
    %v1439 = vadd.f32 %v1383, %v1411
    %v1440 = vadd.f32 %v1384, %v1420
    %v1441 = vadd.f32 %v1385, %v1429
    %v1442 = vadd.f32 %v1386, %v1438
    %v1443 = vld [vmem:[%s3] sm:$0xff]
    %v1444 = vld [vmem:[%s3 + $0x8] sm:$0xff]
    %v1445 = vld [vmem:[%s3 + $0x10] sm:$0xff]
    %v1446 = vld [vmem:[%s3 + $0x18] sm:$0x3f]
    %1448 = vset.pattern.permute.xlu0 0
    %1449 = vperm.xlu0 %1448, %v35
    %v1450 = vpop.permute.xlu0 %1449
    %1452 = vset.pattern.permute.xlu0 0
    %1453 = vperm.xlu0 %1452, %v36
    %v1454 = vpop.permute.xlu0 %1453
    %1456 = vset.pattern.permute.xlu0 0
    %1457 = vperm.xlu0 %1456, %v37
    %v1458 = vpop.permute.xlu0 %1457
    %1460 = vset.pattern.permute.xlu0 0
    %1461 = vperm.xlu0 %1460, %v38
    %v1462 = vpop.permute.xlu0 %1461
    %vm1463 = vcmask 1043456
    %v1464 = vrot.slane %v738, 4
    %v1465 = vrot.slane %v1450, 4
    %v1466 = vsel %vm1463, %v1464, %v1465
    %v1467 = vrot.slane %v1454, 4
    %v1468 = vsel %vm1463, %v1465, %v1467
    %v1469 = vrot.slane %v1458, 4
    %v1470 = vsel %vm1463, %v1467, %v1469
    %v1471 = vrot.slane %v1462, 4
    %v1472 = vsel %vm1463, %v1469, %v1471
    %v1478 = vsel %vm753, %v1443, 0
    %v1481 = vsel %vm753, %v1444, 0
    %v1484 = vsel %vm753, %v1445, 0
    %v1487 = vsel %vm753, %v1446, 0
    %v1490 = vsel %vm80, %v1442, 0
    %1492 = vmatprep.subr.mxu0 0.0
    %v1493 = vand.u32 %v1439, 4294901760
    %1494 = vmatpush1.msra.mxu0 %v1493
    %1495 = vmatprep.subr.mxu0 0.0
    %v1496 = vand.u32 %v1440, 4294901760
    %1497 = vmatpush1.msra.mxu0 %v1496
    %1498 = vmatprep.subr.mxu0 0.0
    %v1499 = vand.u32 %v1441, 4294901760
    %1500 = vmatpush1.msra.mxu0 %v1499
    %1501 = vmatprep.subr.mxu0 0.0
    %v1502 = vand.u32 %v1490, 4294901760
    %1503 = vmatpush1.msra.mxu0 %v1502
    %1504 = vmatprep.subr.mxu0 0.0
    %1505 = vmatpush1.msra.mxu0 0.0
    %1506 = vmatprep.subr.mxu0 0.0
    %1507 = vmatpush1.msra.mxu0 0.0
    %1508 = vmatprep.subr.mxu0 0.0
    %1509 = vmatpush1.msra.mxu0 0.0
    %1510 = vmatprep.subr.mxu0 0.0
    %1511 = vmatpush1.msra.mxu0 0.0
    %1512 = vmatprep.subr.mxu0 0.0
    %1513 = vmatpush1.msra.mxu0 0.0
    %1514 = vmatprep.subr.mxu0 0.0
    %1515 = vmatpush1.msra.mxu0 0.0
    %1516 = vmatprep.subr.mxu0 0.0
    %1517 = vmatpush1.msra.mxu0 0.0
    %1518 = vmatprep.subr.mxu0 0.0
    %1519 = vmatpush1.msra.mxu0 0.0
    %1520 = vmatprep.subr.mxu0 0.0
    %1521 = vmatpush1.msra.mxu0 0.0
    %1522 = vmatprep.subr.mxu0 0.0
    %1523 = vmatpush1.msra.mxu0 0.0
    %1524 = vmatprep.subr.mxu0 0.0
    %1525 = vmatpush1.msra.mxu0 0.0
    %1526 = vmatprep.subr.mxu0 0.0
    %1527 = vmatpush1.msra.mxu0 0.0
    %1528 = vmatprep.subr.mxu0 0.0
    %1529 = vmatpush1.msra.mxu0 0.0
    %1530 = vmatprep.subr.mxu0 0.0
    %1531 = vmatpush1.msra.mxu0 0.0
    %1532 = vmatprep.subr.mxu0 0.0
    %1533 = vmatpush1.msra.mxu0 0.0
    %1534 = vmatprep.subr.mxu0 0.0
    %1535 = vmatpush1.msra.mxu0 0.0
    %1536 = vmatprep.subr.mxu0 0.0
    %1537 = vmatpush1.msra.mxu0 0.0
    %1538 = vmatprep.subr.mxu0 0.0
    %1539 = vmatpush1.msra.mxu0 0.0
    %1540 = vmatprep.subr.mxu0 0.0
    %1541 = vmatpush1.msra.mxu0 0.0
    %1542 = vmatprep.subr.mxu0 0.0
    %1543 = vmatpush1.msra.mxu0 0.0
    %1544 = vmatprep.subr.mxu0 0.0
    %1545 = vmatpush1.msra.mxu0 0.0
    %1546 = vmatprep.subr.mxu0 0.0
    %1547 = vmatpush1.msra.mxu0 0.0
    %1548 = vmatprep.subr.mxu0 0.0
    %1549 = vmatpush1.msra.mxu0 0.0
    %1550 = vmatprep.subr.mxu0 0.0
    %1551 = vmatpush1.msra.mxu0 0.0
    %1552 = vmatprep.subr.mxu0 0.0
    %1553 = vmatpush1.msra.mxu0 0.0
    %1554 = vmatprep.subr.mxu0 0.0
    %1555 = vmatpush1.msra.mxu0 0.0
    %1556 = vmatprep.subr.mxu0 0.0
    %1557 = vmatpush1.msra.mxu0 0.0
    %1558 = vmatprep.subr.mxu0 0.0
    %1559 = vmatpush1.msra.mxu0 0.0
    %1560 = vmatprep.mubr.f32.mxu0 0.0
    %v1561 = vand.u32 %v1478, 4294901760
    %v1562 = vsub.f32 %v1478, %v1561
    %v1563 = vand.u32 %v1562, 4294901760
    %v1564 = vsub.f32 %v1562, %v1563
    %v1565 = vand.u32 %v1564, 4294901760
    %1566 = vmatmul.mubr.f32.gmra.mrb[0].mxu0 %v1565
    %v1567 = vpop.f32.mrb[0].mxu0
    %v1568 = vadd.f32 %v1466, %v1567
    %v1569 = vpop.f32.mrb[0].mxu0
    %1570 = vmatprep.mubr.f32.mxu0 0.0
    %v1571 = vand.u32 %v1481, 4294901760
    %v1572 = vsub.f32 %v1481, %v1571
    %v1573 = vand.u32 %v1572, 4294901760
    %v1574 = vsub.f32 %v1572, %v1573
    %v1575 = vand.u32 %v1574, 4294901760
    %1576 = vmatmul.mubr.f32.gmra.mrb[0].mxu0 %v1575
    %v1577 = vpop.f32.mrb[0].mxu0
    %v1578 = vadd.f32 %v1468, %v1577
    %v1579 = vpop.f32.mrb[0].mxu0
    %1580 = vmatprep.mubr.f32.mxu0 0.0
    %v1581 = vand.u32 %v1484, 4294901760
    %v1582 = vsub.f32 %v1484, %v1581
    %v1583 = vand.u32 %v1582, 4294901760
    %v1584 = vsub.f32 %v1582, %v1583
    %v1585 = vand.u32 %v1584, 4294901760
    %1586 = vmatmul.mubr.f32.gmra.mrb[0].mxu0 %v1585
    %v1587 = vpop.f32.mrb[0].mxu0
    %v1588 = vadd.f32 %v1470, %v1587
    %v1589 = vpop.f32.mrb[0].mxu0
    %1590 = vmatprep.mubr.f32.mxu0 0.0
    %v1591 = vand.u32 %v1487, 4294901760
    %v1592 = vsub.f32 %v1487, %v1591
    %v1593 = vand.u32 %v1592, 4294901760
    %v1594 = vsub.f32 %v1592, %v1593
    %v1595 = vand.u32 %v1594, 4294901760
    %1596 = vmatmul.mubr.f32.gmra.mrb[0].mxu0 %v1595
    %v1597 = vpop.f32.mrb[0].mxu0
    %v1598 = vadd.f32 %v1472, %v1597
    %v1599 = vpop.f32.mrb[0].mxu0
    %1600 = vdwg.mxu0
    %1601 = vmatprep.subr.mxu0 0.0
    %v1602 = vand.u32 %v1439, 4294901760
    %v1603 = vsub.f32 %v1439, %v1602
    %v1604 = vand.u32 %v1603, 4294901760
    %v1605 = vsub.f32 %v1603, %v1604
    %v1606 = vand.u32 %v1605, 4294901760
    %1607 = vmatpush1.msra.mxu0 %v1606
    %1608 = vmatprep.subr.mxu0 0.0
    %v1609 = vand.u32 %v1440, 4294901760
    %v1610 = vsub.f32 %v1440, %v1609
    %v1611 = vand.u32 %v1610, 4294901760
    %v1612 = vsub.f32 %v1610, %v1611
    %v1613 = vand.u32 %v1612, 4294901760
    %1614 = vmatpush1.msra.mxu0 %v1613
    %1615 = vmatprep.subr.mxu0 0.0
    %v1616 = vand.u32 %v1441, 4294901760
    %v1617 = vsub.f32 %v1441, %v1616
    %v1618 = vand.u32 %v1617, 4294901760
    %v1619 = vsub.f32 %v1617, %v1618
    %v1620 = vand.u32 %v1619, 4294901760
    %1621 = vmatpush1.msra.mxu0 %v1620
    %1622 = vmatprep.subr.mxu0 0.0
    %v1623 = vand.u32 %v1490, 4294901760
    %v1624 = vsub.f32 %v1490, %v1623
    %v1625 = vand.u32 %v1624, 4294901760
    %v1626 = vsub.f32 %v1624, %v1625
    %v1627 = vand.u32 %v1626, 4294901760
    %1628 = vmatpush1.msra.mxu0 %v1627
    %1629 = vmatprep.subr.mxu0 0.0
    %1630 = vmatpush1.msra.mxu0 0.0
    %1631 = vmatprep.subr.mxu0 0.0
    %1632 = vmatpush1.msra.mxu0 0.0
    %1633 = vmatprep.subr.mxu0 0.0
    %1634 = vmatpush1.msra.mxu0 0.0
    %1635 = vmatprep.subr.mxu0 0.0
    %1636 = vmatpush1.msra.mxu0 0.0
    %1637 = vmatprep.subr.mxu0 0.0
    %1638 = vmatpush1.msra.mxu0 0.0
    %1639 = vmatprep.subr.mxu0 0.0
    %1640 = vmatpush1.msra.mxu0 0.0
    %1641 = vmatprep.subr.mxu0 0.0
    %1642 = vmatpush1.msra.mxu0 0.0
    %1643 = vmatprep.subr.mxu0 0.0
    %1644 = vmatpush1.msra.mxu0 0.0
    %1645 = vmatprep.subr.mxu0 0.0
    %1646 = vmatpush1.msra.mxu0 0.0
    %1647 = vmatprep.subr.mxu0 0.0
    %1648 = vmatpush1.msra.mxu0 0.0
    %1649 = vmatprep.subr.mxu0 0.0
    %1650 = vmatpush1.msra.mxu0 0.0
    %1651 = vmatprep.subr.mxu0 0.0
    %1652 = vmatpush1.msra.mxu0 0.0
    %1653 = vmatprep.subr.mxu0 0.0
    %1654 = vmatpush1.msra.mxu0 0.0
    %1655 = vmatprep.subr.mxu0 0.0
    %1656 = vmatpush1.msra.mxu0 0.0
    %1657 = vmatprep.subr.mxu0 0.0
    %1658 = vmatpush1.msra.mxu0 0.0
    %1659 = vmatprep.subr.mxu0 0.0
    %1660 = vmatpush1.msra.mxu0 0.0
    %1661 = vmatprep.subr.mxu0 0.0
    %1662 = vmatpush1.msra.mxu0 0.0
    %1663 = vmatprep.subr.mxu0 0.0
    %1664 = vmatpush1.msra.mxu0 0.0
    %1665 = vmatprep.subr.mxu0 0.0
    %1666 = vmatpush1.msra.mxu0 0.0
    %1667 = vmatprep.subr.mxu0 0.0
    %1668 = vmatpush1.msra.mxu0 0.0
    %1669 = vmatprep.subr.mxu0 0.0
    %1670 = vmatpush1.msra.mxu0 0.0
    %1671 = vmatprep.subr.mxu0 0.0
    %1672 = vmatpush1.msra.mxu0 0.0
    %1673 = vmatprep.subr.mxu0 0.0
    %1674 = vmatpush1.msra.mxu0 0.0
    %1675 = vmatprep.subr.mxu0 0.0
    %1676 = vmatpush1.msra.mxu0 0.0
    %1677 = vmatprep.subr.mxu0 0.0
    %1678 = vmatpush1.msra.mxu0 0.0
    %1679 = vmatprep.subr.mxu0 0.0
    %1680 = vmatpush1.msra.mxu0 0.0
    %1681 = vmatprep.subr.mxu0 0.0
    %1682 = vmatpush1.msra.mxu0 0.0
    %1683 = vmatprep.subr.mxu0 0.0
    %1684 = vmatpush1.msra.mxu0 0.0
    %1685 = vmatprep.mubr.f32.mxu0 0.0
    %v1686 = vand.u32 %v1478, 4294901760
    %1687 = vmatmul.mubr.f32.gmra.mrb[0].mxu0 %v1686
    %v1688 = vpop.f32.mrb[0].mxu0
    %v1689 = vadd.f32 %v1568, %v1688
    %v1690 = vpop.f32.mrb[0].mxu0
    %1691 = vmatprep.mubr.f32.mxu0 0.0
    %v1692 = vand.u32 %v1481, 4294901760
    %1693 = vmatmul.mubr.f32.gmra.mrb[0].mxu0 %v1692
    %v1694 = vpop.f32.mrb[0].mxu0
    %v1695 = vadd.f32 %v1578, %v1694
    %v1696 = vpop.f32.mrb[0].mxu0
    %1697 = vmatprep.mubr.f32.mxu0 0.0
    %v1698 = vand.u32 %v1484, 4294901760
    %1699 = vmatmul.mubr.f32.gmra.mrb[0].mxu0 %v1698
    %v1700 = vpop.f32.mrb[0].mxu0
    %v1701 = vadd.f32 %v1588, %v1700
    %v1702 = vpop.f32.mrb[0].mxu0
    %1703 = vmatprep.mubr.f32.mxu0 0.0
    %v1704 = vand.u32 %v1487, 4294901760
    %1705 = vmatmul.mubr.f32.gmra.mrb[0].mxu0 %v1704
    %v1706 = vpop.f32.mrb[0].mxu0
    %v1707 = vadd.f32 %v1598, %v1706
    %v1708 = vpop.f32.mrb[0].mxu0
    %1709 = vdwg.mxu0
    %1710 = vmatprep.subr.mxu0 0.0
    %v1711 = vand.u32 %v1439, 4294901760
    %v1712 = vsub.f32 %v1439, %v1711
    %1713 = vmatpush1.msra.mxu0 %v1712
    %1714 = vmatprep.subr.mxu0 0.0
    %v1715 = vand.u32 %v1440, 4294901760
    %v1716 = vsub.f32 %v1440, %v1715
    %1717 = vmatpush1.msra.mxu0 %v1716
    %1718 = vmatprep.subr.mxu0 0.0
    %v1719 = vand.u32 %v1441, 4294901760
    %v1720 = vsub.f32 %v1441, %v1719
    %1721 = vmatpush1.msra.mxu0 %v1720
    %1722 = vmatprep.subr.mxu0 0.0
    %v1723 = vand.u32 %v1490, 4294901760
    %v1724 = vsub.f32 %v1490, %v1723
    %1725 = vmatpush1.msra.mxu0 %v1724
    %1726 = vmatprep.subr.mxu0 0.0
    %1727 = vmatpush1.msra.mxu0 0.0
    %1728 = vmatprep.subr.mxu0 0.0
    %1729 = vmatpush1.msra.mxu0 0.0
    %1730 = vmatprep.subr.mxu0 0.0
    %1731 = vmatpush1.msra.mxu0 0.0
    %1732 = vmatprep.subr.mxu0 0.0
    %1733 = vmatpush1.msra.mxu0 0.0
    %1734 = vmatprep.subr.mxu0 0.0
    %1735 = vmatpush1.msra.mxu0 0.0
    %1736 = vmatprep.subr.mxu0 0.0
    %1737 = vmatpush1.msra.mxu0 0.0
    %1738 = vmatprep.subr.mxu0 0.0
    %1739 = vmatpush1.msra.mxu0 0.0
    %1740 = vmatprep.subr.mxu0 0.0
    %1741 = vmatpush1.msra.mxu0 0.0
    %1742 = vmatprep.subr.mxu0 0.0
    %1743 = vmatpush1.msra.mxu0 0.0
    %1744 = vmatprep.subr.mxu0 0.0
    %1745 = vmatpush1.msra.mxu0 0.0
    %1746 = vmatprep.subr.mxu0 0.0
    %1747 = vmatpush1.msra.mxu0 0.0
    %1748 = vmatprep.subr.mxu0 0.0
    %1749 = vmatpush1.msra.mxu0 0.0
    %1750 = vmatprep.subr.mxu0 0.0
    %1751 = vmatpush1.msra.mxu0 0.0
    %1752 = vmatprep.subr.mxu0 0.0
    %1753 = vmatpush1.msra.mxu0 0.0
    %1754 = vmatprep.subr.mxu0 0.0
    %1755 = vmatpush1.msra.mxu0 0.0
    %1756 = vmatprep.subr.mxu0 0.0
    %1757 = vmatpush1.msra.mxu0 0.0
    %1758 = vmatprep.subr.mxu0 0.0
    %1759 = vmatpush1.msra.mxu0 0.0
    %1760 = vmatprep.subr.mxu0 0.0
    %1761 = vmatpush1.msra.mxu0 0.0
    %1762 = vmatprep.subr.mxu0 0.0
    %1763 = vmatpush1.msra.mxu0 0.0
    %1764 = vmatprep.subr.mxu0 0.0
    %1765 = vmatpush1.msra.mxu0 0.0
    %1766 = vmatprep.subr.mxu0 0.0
    %1767 = vmatpush1.msra.mxu0 0.0
    %1768 = vmatprep.subr.mxu0 0.0
    %1769 = vmatpush1.msra.mxu0 0.0
    %1770 = vmatprep.subr.mxu0 0.0
    %1771 = vmatpush1.msra.mxu0 0.0
    %1772 = vmatprep.subr.mxu0 0.0
    %1773 = vmatpush1.msra.mxu0 0.0
    %1774 = vmatprep.subr.mxu0 0.0
    %1775 = vmatpush1.msra.mxu0 0.0
    %1776 = vmatprep.subr.mxu0 0.0
    %1777 = vmatpush1.msra.mxu0 0.0
    %1778 = vmatprep.subr.mxu0 0.0
    %1779 = vmatpush1.msra.mxu0 0.0
    %1780 = vmatprep.subr.mxu0 0.0
    %1781 = vmatpush1.msra.mxu0 0.0
    %1782 = vmatprep.mubr.f32.mxu0 0.0
    %v1783 = vand.u32 %v1478, 4294901760
    %v1784 = vsub.f32 %v1478, %v1783
    %1785 = vmatmul.mubr.f32.gmra.mrb[0].mxu0 %v1784
    %v1786 = vpop.f32.mrb[0].mxu0
    %v1787 = vadd.f32 %v1689, %v1786
    %v1788 = vpop.f32.mrb[0].mxu0
    %1789 = vmatprep.mubr.f32.mxu0 0.0
    %v1790 = vand.u32 %v1481, 4294901760
    %v1791 = vsub.f32 %v1481, %v1790
    %1792 = vmatmul.mubr.f32.gmra.mrb[0].mxu0 %v1791
    %v1793 = vpop.f32.mrb[0].mxu0
    %v1794 = vadd.f32 %v1695, %v1793
    %v1795 = vpop.f32.mrb[0].mxu0
    %1796 = vmatprep.mubr.f32.mxu0 0.0
    %v1797 = vand.u32 %v1484, 4294901760
    %v1798 = vsub.f32 %v1484, %v1797
    %1799 = vmatmul.mubr.f32.gmra.mrb[0].mxu0 %v1798
    %v1800 = vpop.f32.mrb[0].mxu0
    %v1801 = vadd.f32 %v1701, %v1800
    %v1802 = vpop.f32.mrb[0].mxu0
    %1803 = vmatprep.mubr.f32.mxu0 0.0
    %v1804 = vand.u32 %v1487, 4294901760
    %v1805 = vsub.f32 %v1487, %v1804
    %1806 = vmatmul.mubr.f32.gmra.mrb[0].mxu0 %v1805
    %v1807 = vpop.f32.mrb[0].mxu0
    %v1808 = vadd.f32 %v1707, %v1807
    %v1809 = vpop.f32.mrb[0].mxu0
    %1810 = vdwg.mxu0
    %1811 = vmatprep.subr.mxu0 0.0
    %v1812 = vand.u32 %v1439, 4294901760
    %1813 = vmatpush1.msra.mxu0 %v1812
    %1814 = vmatprep.subr.mxu0 0.0
    %v1815 = vand.u32 %v1440, 4294901760
    %1816 = vmatpush1.msra.mxu0 %v1815
    %1817 = vmatprep.subr.mxu0 0.0
    %v1818 = vand.u32 %v1441, 4294901760
    %1819 = vmatpush1.msra.mxu0 %v1818
    %1820 = vmatprep.subr.mxu0 0.0
    %v1821 = vand.u32 %v1490, 4294901760
    %1822 = vmatpush1.msra.mxu0 %v1821
    %1823 = vmatprep.subr.mxu0 0.0
    %1824 = vmatpush1.msra.mxu0 0.0
    %1825 = vmatprep.subr.mxu0 0.0
    %1826 = vmatpush1.msra.mxu0 0.0
    %1827 = vmatprep.subr.mxu0 0.0
    %1828 = vmatpush1.msra.mxu0 0.0
    %1829 = vmatprep.subr.mxu0 0.0
    %1830 = vmatpush1.msra.mxu0 0.0
    %1831 = vmatprep.subr.mxu0 0.0
    %1832 = vmatpush1.msra.mxu0 0.0
    %1833 = vmatprep.subr.mxu0 0.0
    %1834 = vmatpush1.msra.mxu0 0.0
    %1835 = vmatprep.subr.mxu0 0.0
    %1836 = vmatpush1.msra.mxu0 0.0
    %1837 = vmatprep.subr.mxu0 0.0
    %1838 = vmatpush1.msra.mxu0 0.0
    %1839 = vmatprep.subr.mxu0 0.0
    %1840 = vmatpush1.msra.mxu0 0.0
    %1841 = vmatprep.subr.mxu0 0.0
    %1842 = vmatpush1.msra.mxu0 0.0
    %1843 = vmatprep.subr.mxu0 0.0
    %1844 = vmatpush1.msra.mxu0 0.0
    %1845 = vmatprep.subr.mxu0 0.0
    %1846 = vmatpush1.msra.mxu0 0.0
    %1847 = vmatprep.subr.mxu0 0.0
    %1848 = vmatpush1.msra.mxu0 0.0
    %1849 = vmatprep.subr.mxu0 0.0
    %1850 = vmatpush1.msra.mxu0 0.0
    %1851 = vmatprep.subr.mxu0 0.0
    %1852 = vmatpush1.msra.mxu0 0.0
    %1853 = vmatprep.subr.mxu0 0.0
    %1854 = vmatpush1.msra.mxu0 0.0
    %1855 = vmatprep.subr.mxu0 0.0
    %1856 = vmatpush1.msra.mxu0 0.0
    %1857 = vmatprep.subr.mxu0 0.0
    %1858 = vmatpush1.msra.mxu0 0.0
    %1859 = vmatprep.subr.mxu0 0.0
    %1860 = vmatpush1.msra.mxu0 0.0
    %1861 = vmatprep.subr.mxu0 0.0
    %1862 = vmatpush1.msra.mxu0 0.0
    %1863 = vmatprep.subr.mxu0 0.0
    %1864 = vmatpush1.msra.mxu0 0.0
    %1865 = vmatprep.subr.mxu0 0.0
    %1866 = vmatpush1.msra.mxu0 0.0
    %1867 = vmatprep.subr.mxu0 0.0
    %1868 = vmatpush1.msra.mxu0 0.0
    %1869 = vmatprep.subr.mxu0 0.0
    %1870 = vmatpush1.msra.mxu0 0.0
    %1871 = vmatprep.subr.mxu0 0.0
    %1872 = vmatpush1.msra.mxu0 0.0
    %1873 = vmatprep.subr.mxu0 0.0
    %1874 = vmatpush1.msra.mxu0 0.0
    %1875 = vmatprep.subr.mxu0 0.0
    %1876 = vmatpush1.msra.mxu0 0.0
    %1877 = vmatprep.subr.mxu0 0.0
    %1878 = vmatpush1.msra.mxu0 0.0
    %1879 = vmatprep.mubr.f32.mxu0 0.0
    %v1880 = vand.u32 %v1478, 4294901760
    %v1881 = vsub.f32 %v1478, %v1880
    %v1882 = vand.u32 %v1881, 4294901760
    %1883 = vmatmul.mubr.f32.gmra.mrb[0].mxu0 %v1882
    %v1884 = vpop.f32.mrb[0].mxu0
    %v1885 = vadd.f32 %v1787, %v1884
    %v1886 = vpop.f32.mrb[0].mxu0
    %1887 = vmatprep.mubr.f32.mxu0 0.0
    %v1888 = vand.u32 %v1481, 4294901760
    %v1889 = vsub.f32 %v1481, %v1888
    %v1890 = vand.u32 %v1889, 4294901760
    %1891 = vmatmul.mubr.f32.gmra.mrb[0].mxu0 %v1890
    %v1892 = vpop.f32.mrb[0].mxu0
    %v1893 = vadd.f32 %v1794, %v1892
    %v1894 = vpop.f32.mrb[0].mxu0
    %1895 = vmatprep.mubr.f32.mxu0 0.0
    %v1896 = vand.u32 %v1484, 4294901760
    %v1897 = vsub.f32 %v1484, %v1896
    %v1898 = vand.u32 %v1897, 4294901760
    %1899 = vmatmul.mubr.f32.gmra.mrb[0].mxu0 %v1898
    %v1900 = vpop.f32.mrb[0].mxu0
    %v1901 = vadd.f32 %v1801, %v1900
    %v1902 = vpop.f32.mrb[0].mxu0
    %1903 = vmatprep.mubr.f32.mxu0 0.0
    %v1904 = vand.u32 %v1487, 4294901760
    %v1905 = vsub.f32 %v1487, %v1904
    %v1906 = vand.u32 %v1905, 4294901760
    %1907 = vmatmul.mubr.f32.gmra.mrb[0].mxu0 %v1906
    %v1908 = vpop.f32.mrb[0].mxu0
    %v1909 = vadd.f32 %v1808, %v1908
    %v1910 = vpop.f32.mrb[0].mxu0
    %1911 = vdwg.mxu0
    %1912 = vmatprep.subr.mxu0 0.0
    %v1913 = vand.u32 %v1439, 4294901760
    %v1914 = vsub.f32 %v1439, %v1913
    %v1915 = vand.u32 %v1914, 4294901760
    %1916 = vmatpush1.msra.mxu0 %v1915
    %1917 = vmatprep.subr.mxu0 0.0
    %v1918 = vand.u32 %v1440, 4294901760
    %v1919 = vsub.f32 %v1440, %v1918
    %v1920 = vand.u32 %v1919, 4294901760
    %1921 = vmatpush1.msra.mxu0 %v1920
    %1922 = vmatprep.subr.mxu0 0.0
    %v1923 = vand.u32 %v1441, 4294901760
    %v1924 = vsub.f32 %v1441, %v1923
    %v1925 = vand.u32 %v1924, 4294901760
    %1926 = vmatpush1.msra.mxu0 %v1925
    %1927 = vmatprep.subr.mxu0 0.0
    %v1928 = vand.u32 %v1490, 4294901760
    %v1929 = vsub.f32 %v1490, %v1928
    %v1930 = vand.u32 %v1929, 4294901760
    %1931 = vmatpush1.msra.mxu0 %v1930
    %1932 = vmatprep.subr.mxu0 0.0
    %1933 = vmatpush1.msra.mxu0 0.0
    %1934 = vmatprep.subr.mxu0 0.0
    %1935 = vmatpush1.msra.mxu0 0.0
    %1936 = vmatprep.subr.mxu0 0.0
    %1937 = vmatpush1.msra.mxu0 0.0
    %1938 = vmatprep.subr.mxu0 0.0
    %1939 = vmatpush1.msra.mxu0 0.0
    %1940 = vmatprep.subr.mxu0 0.0
    %1941 = vmatpush1.msra.mxu0 0.0
    %1942 = vmatprep.subr.mxu0 0.0
    %1943 = vmatpush1.msra.mxu0 0.0
    %1944 = vmatprep.subr.mxu0 0.0
    %1945 = vmatpush1.msra.mxu0 0.0
    %1946 = vmatprep.subr.mxu0 0.0
    %1947 = vmatpush1.msra.mxu0 0.0
    %1948 = vmatprep.subr.mxu0 0.0
    %1949 = vmatpush1.msra.mxu0 0.0
    %1950 = vmatprep.subr.mxu0 0.0
    %1951 = vmatpush1.msra.mxu0 0.0
    %1952 = vmatprep.subr.mxu0 0.0
    %1953 = vmatpush1.msra.mxu0 0.0
    %1954 = vmatprep.subr.mxu0 0.0
    %1955 = vmatpush1.msra.mxu0 0.0
    %1956 = vmatprep.subr.mxu0 0.0
    %1957 = vmatpush1.msra.mxu0 0.0
    %1958 = vmatprep.subr.mxu0 0.0
    %1959 = vmatpush1.msra.mxu0 0.0
    %1960 = vmatprep.subr.mxu0 0.0
    %1961 = vmatpush1.msra.mxu0 0.0
    %1962 = vmatprep.subr.mxu0 0.0
    %1963 = vmatpush1.msra.mxu0 0.0
    %1964 = vmatprep.subr.mxu0 0.0
    %1965 = vmatpush1.msra.mxu0 0.0
    %1966 = vmatprep.subr.mxu0 0.0
    %1967 = vmatpush1.msra.mxu0 0.0
    %1968 = vmatprep.subr.mxu0 0.0
    %1969 = vmatpush1.msra.mxu0 0.0
    %1970 = vmatprep.subr.mxu0 0.0
    %1971 = vmatpush1.msra.mxu0 0.0
    %1972 = vmatprep.subr.mxu0 0.0
    %1973 = vmatpush1.msra.mxu0 0.0
    %1974 = vmatprep.subr.mxu0 0.0
    %1975 = vmatpush1.msra.mxu0 0.0
    %1976 = vmatprep.subr.mxu0 0.0
    %1977 = vmatpush1.msra.mxu0 0.0
    %1978 = vmatprep.subr.mxu0 0.0
    %1979 = vmatpush1.msra.mxu0 0.0
    %1980 = vmatprep.subr.mxu0 0.0
    %1981 = vmatpush1.msra.mxu0 0.0
    %1982 = vmatprep.subr.mxu0 0.0
    %1983 = vmatpush1.msra.mxu0 0.0
    %1984 = vmatprep.subr.mxu0 0.0
    %1985 = vmatpush1.msra.mxu0 0.0
    %1986 = vmatprep.subr.mxu0 0.0
    %1987 = vmatpush1.msra.mxu0 0.0
    %1988 = vmatprep.mubr.f32.mxu0 0.0
    %v1989 = vand.u32 %v1478, 4294901760
    %1990 = vmatmul.mubr.f32.gmra.mrb[0].mxu0 %v1989
    %v1991 = vpop.f32.mrb[0].mxu0
    %v1992 = vadd.f32 %v1885, %v1991
    %v1993 = vpop.f32.mrb[0].mxu0
    %1994 = vmatprep.mubr.f32.mxu0 0.0
    %v1995 = vand.u32 %v1481, 4294901760
    %1996 = vmatmul.mubr.f32.gmra.mrb[0].mxu0 %v1995
    %v1997 = vpop.f32.mrb[0].mxu0
    %v1998 = vadd.f32 %v1893, %v1997
    %v1999 = vpop.f32.mrb[0].mxu0
    %2000 = vmatprep.mubr.f32.mxu0 0.0
    %v2001 = vand.u32 %v1484, 4294901760
    %2002 = vmatmul.mubr.f32.gmra.mrb[0].mxu0 %v2001
    %v2003 = vpop.f32.mrb[0].mxu0
    %v2004 = vadd.f32 %v1901, %v2003
    %v2005 = vpop.f32.mrb[0].mxu0
    %2006 = vmatprep.mubr.f32.mxu0 0.0
    %v2007 = vand.u32 %v1487, 4294901760
    %2008 = vmatmul.mubr.f32.gmra.mrb[0].mxu0 %v2007
    %v2009 = vpop.f32.mrb[0].mxu0
    %v2010 = vadd.f32 %v1909, %v2009
    %v2011 = vpop.f32.mrb[0].mxu0
    %2012 = vdwg.mxu0
    %2013 = vmatprep.subr.mxu0 0.0
    %v2014 = vand.u32 %v1439, 4294901760
    %2015 = vmatpush1.msra.mxu0 %v2014
    %2016 = vmatprep.subr.mxu0 0.0
    %v2017 = vand.u32 %v1440, 4294901760
    %2018 = vmatpush1.msra.mxu0 %v2017
    %2019 = vmatprep.subr.mxu0 0.0
    %v2020 = vand.u32 %v1441, 4294901760
    %2021 = vmatpush1.msra.mxu0 %v2020
    %2022 = vmatprep.subr.mxu0 0.0
    %v2023 = vand.u32 %v1490, 4294901760
    %2024 = vmatpush1.msra.mxu0 %v2023
    %2025 = vmatprep.subr.mxu0 0.0
    %2026 = vmatpush1.msra.mxu0 0.0
    %2027 = vmatprep.subr.mxu0 0.0
    %2028 = vmatpush1.msra.mxu0 0.0
    %2029 = vmatprep.subr.mxu0 0.0
    %2030 = vmatpush1.msra.mxu0 0.0
    %2031 = vmatprep.subr.mxu0 0.0
    %2032 = vmatpush1.msra.mxu0 0.0
    %2033 = vmatprep.subr.mxu0 0.0
    %2034 = vmatpush1.msra.mxu0 0.0
    %2035 = vmatprep.subr.mxu0 0.0
    %2036 = vmatpush1.msra.mxu0 0.0
    %2037 = vmatprep.subr.mxu0 0.0
    %2038 = vmatpush1.msra.mxu0 0.0
    %2039 = vmatprep.subr.mxu0 0.0
    %2040 = vmatpush1.msra.mxu0 0.0
    %2041 = vmatprep.subr.mxu0 0.0
    %2042 = vmatpush1.msra.mxu0 0.0
    %2043 = vmatprep.subr.mxu0 0.0
    %2044 = vmatpush1.msra.mxu0 0.0
    %2045 = vmatprep.subr.mxu0 0.0
    %2046 = vmatpush1.msra.mxu0 0.0
    %2047 = vmatprep.subr.mxu0 0.0
    %2048 = vmatpush1.msra.mxu0 0.0
    %2049 = vmatprep.subr.mxu0 0.0
    %2050 = vmatpush1.msra.mxu0 0.0
    %2051 = vmatprep.subr.mxu0 0.0
    %2052 = vmatpush1.msra.mxu0 0.0
    %2053 = vmatprep.subr.mxu0 0.0
    %2054 = vmatpush1.msra.mxu0 0.0
    %2055 = vmatprep.subr.mxu0 0.0
    %2056 = vmatpush1.msra.mxu0 0.0
    %2057 = vmatprep.subr.mxu0 0.0
    %2058 = vmatpush1.msra.mxu0 0.0
    %2059 = vmatprep.subr.mxu0 0.0
    %2060 = vmatpush1.msra.mxu0 0.0
    %2061 = vmatprep.subr.mxu0 0.0
    %2062 = vmatpush1.msra.mxu0 0.0
    %2063 = vmatprep.subr.mxu0 0.0
    %2064 = vmatpush1.msra.mxu0 0.0
    %2065 = vmatprep.subr.mxu0 0.0
    %2066 = vmatpush1.msra.mxu0 0.0
    %2067 = vmatprep.subr.mxu0 0.0
    %2068 = vmatpush1.msra.mxu0 0.0
    %2069 = vmatprep.subr.mxu0 0.0
    %2070 = vmatpush1.msra.mxu0 0.0
    %2071 = vmatprep.subr.mxu0 0.0
    %2072 = vmatpush1.msra.mxu0 0.0
    %2073 = vmatprep.subr.mxu0 0.0
    %2074 = vmatpush1.msra.mxu0 0.0
    %2075 = vmatprep.subr.mxu0 0.0
    %2076 = vmatpush1.msra.mxu0 0.0
    %2077 = vmatprep.subr.mxu0 0.0
    %2078 = vmatpush1.msra.mxu0 0.0
    %2079 = vmatprep.subr.mxu0 0.0
    %2080 = vmatpush1.msra.mxu0 0.0
    %2081 = vmatprep.mubr.f32.mxu0 0.0
    %v2082 = vand.u32 %v1478, 4294901760
    %2083 = vmatmul.mubr.f32.gmra.mrb[0].mxu0 %v2082
    %v2084 = vpop.f32.mrb[0].mxu0
    %v2085 = vadd.f32 %v1992, %v2084
    %v2086 = vpop.f32.mrb[0].mxu0
    %2087 = vmatprep.mubr.f32.mxu0 0.0
    %v2088 = vand.u32 %v1481, 4294901760
    %2089 = vmatmul.mubr.f32.gmra.mrb[0].mxu0 %v2088
    %v2090 = vpop.f32.mrb[0].mxu0
    %v2091 = vadd.f32 %v1998, %v2090
    %v2092 = vpop.f32.mrb[0].mxu0
    %2093 = vmatprep.mubr.f32.mxu0 0.0
    %v2094 = vand.u32 %v1484, 4294901760
    %2095 = vmatmul.mubr.f32.gmra.mrb[0].mxu0 %v2094
    %v2096 = vpop.f32.mrb[0].mxu0
    %v2097 = vadd.f32 %v2004, %v2096
    %v2098 = vpop.f32.mrb[0].mxu0
    %2099 = vmatprep.mubr.f32.mxu0 0.0
    %v2100 = vand.u32 %v1487, 4294901760
    %2101 = vmatmul.mubr.f32.gmra.mrb[0].mxu0 %v2100
    %v2102 = vpop.f32.mrb[0].mxu0
    %v2103 = vadd.f32 %v2010, %v2102
    %v2104 = vpop.f32.mrb[0].mxu0
    %2105 = vdwg.mxu0
    %v2106 = vmax.f32 %v2085, 0.0
    %v2107 = vmax.f32 %v2091, 0.0
    %v2108 = vmax.f32 %v2097, 0.0
    %v2109 = vmax.f32 %v2103, 0.0
    %v2110 = vand.u32 2147483647, %v2085
    %v2111 = vand.u32 2147483647, %v2091
    %v2112 = vand.u32 2147483647, %v2097
    %v2113 = vand.u32 2147483647, %v2103
    %v2114 = vsub.f32 0.0, %v2110
    %v2115 = vsub.f32 0.0, %v2111
    %v2116 = vsub.f32 0.0, %v2112
    %v2117 = vsub.f32 0.0, %v2113
    %v2118 = vmul.f32 %v2114, 1.442695
    %v2119 = vpow.pop %v2118
    %v2120 = vmul.f32 %v2115, 1.442695
    %v2121 = vpow.pop %v2120
    %v2122 = vmul.f32 %v2116, 1.442695
    %v2123 = vpow.pop %v2122
    %v2124 = vmul.f32 %v2117, 1.442695
    %v2125 = vpow.pop %v2124
    %v2126 = vadd.f32 %v2119, 1.0
    %v2127 = vlog2.pop %v2126
    %v2128 = vmul.f32 %v2127, 0.6931472
    %v2129 = vmul.f32 -0.5, %v2119
    %v2130 = vadd.f32 %v2129, 1.0
    %v2131 = vmul.f32 %v2130, %v2119
    %v2132 = vand.u32 2147483647, %v2119
    %vm2133 = vcmp.lt.f32.partialorder %v2132, 0.0004427343
    %v2134 = vsel %vm2133, %v2131, %v2128
    %v2135 = vadd.f32 %v2121, 1.0
    %v2136 = vlog2.pop %v2135
    %v2137 = vmul.f32 %v2136, 0.6931472
    %v2138 = vmul.f32 -0.5, %v2121
    %v2139 = vadd.f32 %v2138, 1.0
    %v2140 = vmul.f32 %v2139, %v2121
    %v2141 = vand.u32 2147483647, %v2121
    %vm2142 = vcmp.lt.f32.partialorder %v2141, 0.0004427343
    %v2143 = vsel %vm2142, %v2140, %v2137
    %v2144 = vadd.f32 %v2123, 1.0
    %v2145 = vlog2.pop %v2144
    %v2146 = vmul.f32 %v2145, 0.6931472
    %v2147 = vmul.f32 -0.5, %v2123
    %v2148 = vadd.f32 %v2147, 1.0
    %v2149 = vmul.f32 %v2148, %v2123
    %v2150 = vand.u32 2147483647, %v2123
    %vm2151 = vcmp.lt.f32.partialorder %v2150, 0.0004427343
    %v2152 = vsel %vm2151, %v2149, %v2146
    %v2153 = vadd.f32 %v2125, 1.0
    %v2154 = vlog2.pop %v2153
    %v2155 = vmul.f32 %v2154, 0.6931472
    %v2156 = vmul.f32 -0.5, %v2125
    %v2157 = vadd.f32 %v2156, 1.0
    %v2158 = vmul.f32 %v2157, %v2125
    %v2159 = vand.u32 2147483647, %v2125
    %vm2160 = vcmp.lt.f32.partialorder %v2159, 0.0004427343
    %v2161 = vsel %vm2160, %v2158, %v2155
    %v2162 = vadd.f32 %v2106, %v2134
    %v2163 = vadd.f32 %v2107, %v2143
    %v2164 = vadd.f32 %v2108, %v2152
    %v2165 = vadd.f32 %v2109, %v2161
    %v2166 = vld [vmem:[%s4] sm:$0xff]
    %v2167 = vld [vmem:[%s4 + $0x8] sm:$0xff]
    %v2168 = vld [vmem:[%s4 + $0x10] sm:$0xff]
    %2170 = vset.pattern.permute.xlu0 0
    %2171 = vperm.xlu0 %2170, %v39
    %v2172 = vpop.permute.xlu0 %2171
    %2174 = vset.pattern.permute.xlu0 0
    %2175 = vperm.xlu0 %2174, %v40
    %v2176 = vpop.permute.xlu0 %2175
    %2178 = vset.pattern.permute.xlu0 0
    %2179 = vperm.xlu0 %2178, %v41
    %v2180 = vpop.permute.xlu0 %2179
    %v2181 = vrot.slane %v1462, 2
    %v2182 = vrot.slane %v2172, 2
    %v2183 = vsel %vm80, %v2181, %v2182
    %v2184 = vrot.slane %v2176, 2
    %v2185 = vsel %vm80, %v2182, %v2184
    %v2186 = vrot.slane %v2180, 2
    %v2187 = vsel %vm80, %v2184, %v2186
    %v2192 = vsel %vm753, %v2166, 0
    %v2195 = vsel %vm753, %v2167, 0
    %v2198 = vsel %vm753, %v2168, 0
    %v2201 = vsel %vm80, %v2165, 0
    %2203 = vmatprep.subr.mxu0 0.0
    %v2204 = vand.u32 %v2162, 4294901760
    %2205 = vmatpush1.msra.mxu0 %v2204
    %2206 = vmatprep.subr.mxu0 0.0
    %v2207 = vand.u32 %v2163, 4294901760
    %2208 = vmatpush1.msra.mxu0 %v2207
    %2209 = vmatprep.subr.mxu0 0.0
    %v2210 = vand.u32 %v2164, 4294901760
    %2211 = vmatpush1.msra.mxu0 %v2210
    %2212 = vmatprep.subr.mxu0 0.0
    %v2213 = vand.u32 %v2201, 4294901760
    %2214 = vmatpush1.msra.mxu0 %v2213
    %2215 = vmatprep.subr.mxu0 0.0
    %2216 = vmatpush1.msra.mxu0 0.0
    %2217 = vmatprep.subr.mxu0 0.0
    %2218 = vmatpush1.msra.mxu0 0.0
    %2219 = vmatprep.subr.mxu0 0.0
    %2220 = vmatpush1.msra.mxu0 0.0
    %2221 = vmatprep.subr.mxu0 0.0
    %2222 = vmatpush1.msra.mxu0 0.0
    %2223 = vmatprep.subr.mxu0 0.0
    %2224 = vmatpush1.msra.mxu0 0.0
    %2225 = vmatprep.subr.mxu0 0.0
    %2226 = vmatpush1.msra.mxu0 0.0
    %2227 = vmatprep.subr.mxu0 0.0
    %2228 = vmatpush1.msra.mxu0 0.0
    %2229 = vmatprep.subr.mxu0 0.0
    %2230 = vmatpush1.msra.mxu0 0.0
    %2231 = vmatprep.subr.mxu0 0.0
    %2232 = vmatpush1.msra.mxu0 0.0
    %2233 = vmatprep.subr.mxu0 0.0
    %2234 = vmatpush1.msra.mxu0 0.0
    %2235 = vmatprep.subr.mxu0 0.0
    %2236 = vmatpush1.msra.mxu0 0.0
    %2237 = vmatprep.subr.mxu0 0.0
    %2238 = vmatpush1.msra.mxu0 0.0
    %2239 = vmatprep.subr.mxu0 0.0
    %2240 = vmatpush1.msra.mxu0 0.0
    %2241 = vmatprep.subr.mxu0 0.0
    %2242 = vmatpush1.msra.mxu0 0.0
    %2243 = vmatprep.subr.mxu0 0.0
    %2244 = vmatpush1.msra.mxu0 0.0
    %2245 = vmatprep.subr.mxu0 0.0
    %2246 = vmatpush1.msra.mxu0 0.0
    %2247 = vmatprep.subr.mxu0 0.0
    %2248 = vmatpush1.msra.mxu0 0.0
    %2249 = vmatprep.subr.mxu0 0.0
    %2250 = vmatpush1.msra.mxu0 0.0
    %2251 = vmatprep.subr.mxu0 0.0
    %2252 = vmatpush1.msra.mxu0 0.0
    %2253 = vmatprep.subr.mxu0 0.0
    %2254 = vmatpush1.msra.mxu0 0.0
    %2255 = vmatprep.subr.mxu0 0.0
    %2256 = vmatpush1.msra.mxu0 0.0
    %2257 = vmatprep.subr.mxu0 0.0
    %2258 = vmatpush1.msra.mxu0 0.0
    %2259 = vmatprep.subr.mxu0 0.0
    %2260 = vmatpush1.msra.mxu0 0.0
    %2261 = vmatprep.subr.mxu0 0.0
    %2262 = vmatpush1.msra.mxu0 0.0
    %2263 = vmatprep.subr.mxu0 0.0
    %2264 = vmatpush1.msra.mxu0 0.0
    %2265 = vmatprep.subr.mxu0 0.0
    %2266 = vmatpush1.msra.mxu0 0.0
    %2267 = vmatprep.subr.mxu0 0.0
    %2268 = vmatpush1.msra.mxu0 0.0
    %2269 = vmatprep.subr.mxu0 0.0
    %2270 = vmatpush1.msra.mxu0 0.0
    %2271 = vmatprep.mubr.f32.mxu0 0.0
    %v2272 = vand.u32 %v2192, 4294901760
    %v2273 = vsub.f32 %v2192, %v2272
    %v2274 = vand.u32 %v2273, 4294901760
    %v2275 = vsub.f32 %v2273, %v2274
    %v2276 = vand.u32 %v2275, 4294901760
    %2277 = vmatmul.mubr.f32.gmra.mrb[0].mxu0 %v2276
    %v2278 = vpop.f32.mrb[0].mxu0
    %v2279 = vadd.f32 %v2183, %v2278
    %v2280 = vpop.f32.mrb[0].mxu0
    %2281 = vmatprep.mubr.f32.mxu0 0.0
    %v2282 = vand.u32 %v2195, 4294901760
    %v2283 = vsub.f32 %v2195, %v2282
    %v2284 = vand.u32 %v2283, 4294901760
    %v2285 = vsub.f32 %v2283, %v2284
    %v2286 = vand.u32 %v2285, 4294901760
    %2287 = vmatmul.mubr.f32.gmra.mrb[0].mxu0 %v2286
    %v2288 = vpop.f32.mrb[0].mxu0
    %v2289 = vadd.f32 %v2185, %v2288
    %v2290 = vpop.f32.mrb[0].mxu0
    %2291 = vmatprep.mubr.f32.mxu0 0.0
    %v2292 = vand.u32 %v2198, 4294901760
    %v2293 = vsub.f32 %v2198, %v2292
    %v2294 = vand.u32 %v2293, 4294901760
    %v2295 = vsub.f32 %v2293, %v2294
    %v2296 = vand.u32 %v2295, 4294901760
    %2297 = vmatmul.mubr.f32.gmra.mrb[0].mxu0 %v2296
    %v2298 = vpop.f32.mrb[0].mxu0
    %v2299 = vadd.f32 %v2187, %v2298
    %v2300 = vpop.f32.mrb[0].mxu0
    %2301 = vdwg.mxu0
    %2302 = vmatprep.subr.mxu0 0.0
    %v2303 = vand.u32 %v2162, 4294901760
    %v2304 = vsub.f32 %v2162, %v2303
    %v2305 = vand.u32 %v2304, 4294901760
    %v2306 = vsub.f32 %v2304, %v2305
    %v2307 = vand.u32 %v2306, 4294901760
    %2308 = vmatpush1.msra.mxu0 %v2307
    %2309 = vmatprep.subr.mxu0 0.0
    %v2310 = vand.u32 %v2163, 4294901760
    %v2311 = vsub.f32 %v2163, %v2310
    %v2312 = vand.u32 %v2311, 4294901760
    %v2313 = vsub.f32 %v2311, %v2312
    %v2314 = vand.u32 %v2313, 4294901760
    %2315 = vmatpush1.msra.mxu0 %v2314
    %2316 = vmatprep.subr.mxu0 0.0
    %v2317 = vand.u32 %v2164, 4294901760
    %v2318 = vsub.f32 %v2164, %v2317
    %v2319 = vand.u32 %v2318, 4294901760
    %v2320 = vsub.f32 %v2318, %v2319
    %v2321 = vand.u32 %v2320, 4294901760
    %2322 = vmatpush1.msra.mxu0 %v2321
    %2323 = vmatprep.subr.mxu0 0.0
    %v2324 = vand.u32 %v2201, 4294901760
    %v2325 = vsub.f32 %v2201, %v2324
    %v2326 = vand.u32 %v2325, 4294901760
    %v2327 = vsub.f32 %v2325, %v2326
    %v2328 = vand.u32 %v2327, 4294901760
    %2329 = vmatpush1.msra.mxu0 %v2328
    %2330 = vmatprep.subr.mxu0 0.0
    %2331 = vmatpush1.msra.mxu0 0.0
    %2332 = vmatprep.subr.mxu0 0.0
    %2333 = vmatpush1.msra.mxu0 0.0
    %2334 = vmatprep.subr.mxu0 0.0
    %2335 = vmatpush1.msra.mxu0 0.0
    %2336 = vmatprep.subr.mxu0 0.0
    %2337 = vmatpush1.msra.mxu0 0.0
    %2338 = vmatprep.subr.mxu0 0.0
    %2339 = vmatpush1.msra.mxu0 0.0
    %2340 = vmatprep.subr.mxu0 0.0
    %2341 = vmatpush1.msra.mxu0 0.0
    %2342 = vmatprep.subr.mxu0 0.0
    %2343 = vmatpush1.msra.mxu0 0.0
    %2344 = vmatprep.subr.mxu0 0.0
    %2345 = vmatpush1.msra.mxu0 0.0
    %2346 = vmatprep.subr.mxu0 0.0
    %2347 = vmatpush1.msra.mxu0 0.0
    %2348 = vmatprep.subr.mxu0 0.0
    %2349 = vmatpush1.msra.mxu0 0.0
    %2350 = vmatprep.subr.mxu0 0.0
    %2351 = vmatpush1.msra.mxu0 0.0
    %2352 = vmatprep.subr.mxu0 0.0
    %2353 = vmatpush1.msra.mxu0 0.0
    %2354 = vmatprep.subr.mxu0 0.0
    %2355 = vmatpush1.msra.mxu0 0.0
    %2356 = vmatprep.subr.mxu0 0.0
    %2357 = vmatpush1.msra.mxu0 0.0
    %2358 = vmatprep.subr.mxu0 0.0
    %2359 = vmatpush1.msra.mxu0 0.0
    %2360 = vmatprep.subr.mxu0 0.0
    %2361 = vmatpush1.msra.mxu0 0.0
    %2362 = vmatprep.subr.mxu0 0.0
    %2363 = vmatpush1.msra.mxu0 0.0
    %2364 = vmatprep.subr.mxu0 0.0
    %2365 = vmatpush1.msra.mxu0 0.0
    %2366 = vmatprep.subr.mxu0 0.0
    %2367 = vmatpush1.msra.mxu0 0.0
    %2368 = vmatprep.subr.mxu0 0.0
    %2369 = vmatpush1.msra.mxu0 0.0
    %2370 = vmatprep.subr.mxu0 0.0
    %2371 = vmatpush1.msra.mxu0 0.0
    %2372 = vmatprep.subr.mxu0 0.0
    %2373 = vmatpush1.msra.mxu0 0.0
    %2374 = vmatprep.subr.mxu0 0.0
    %2375 = vmatpush1.msra.mxu0 0.0
    %2376 = vmatprep.subr.mxu0 0.0
    %2377 = vmatpush1.msra.mxu0 0.0
    %2378 = vmatprep.subr.mxu0 0.0
    %2379 = vmatpush1.msra.mxu0 0.0
    %2380 = vmatprep.subr.mxu0 0.0
    %2381 = vmatpush1.msra.mxu0 0.0
    %2382 = vmatprep.subr.mxu0 0.0
    %2383 = vmatpush1.msra.mxu0 0.0
    %2384 = vmatprep.subr.mxu0 0.0
    %2385 = vmatpush1.msra.mxu0 0.0
    %2386 = vmatprep.mubr.f32.mxu0 0.0
    %v2387 = vand.u32 %v2192, 4294901760
    %2388 = vmatmul.mubr.f32.gmra.mrb[0].mxu0 %v2387
    %v2389 = vpop.f32.mrb[0].mxu0
    %v2390 = vadd.f32 %v2279, %v2389
    %v2391 = vpop.f32.mrb[0].mxu0
    %2392 = vmatprep.mubr.f32.mxu0 0.0
    %v2393 = vand.u32 %v2195, 4294901760
    %2394 = vmatmul.mubr.f32.gmra.mrb[0].mxu0 %v2393
    %v2395 = vpop.f32.mrb[0].mxu0
    %v2396 = vadd.f32 %v2289, %v2395
    %v2397 = vpop.f32.mrb[0].mxu0
    %2398 = vmatprep.mubr.f32.mxu0 0.0
    %v2399 = vand.u32 %v2198, 4294901760
    %2400 = vmatmul.mubr.f32.gmra.mrb[0].mxu0 %v2399
    %v2401 = vpop.f32.mrb[0].mxu0
    %v2402 = vadd.f32 %v2299, %v2401
    %v2403 = vpop.f32.mrb[0].mxu0
    %2404 = vdwg.mxu0
    %2405 = vmatprep.subr.mxu0 0.0
    %v2406 = vand.u32 %v2162, 4294901760
    %v2407 = vsub.f32 %v2162, %v2406
    %2408 = vmatpush1.msra.mxu0 %v2407
    %2409 = vmatprep.subr.mxu0 0.0
    %v2410 = vand.u32 %v2163, 4294901760
    %v2411 = vsub.f32 %v2163, %v2410
    %2412 = vmatpush1.msra.mxu0 %v2411
    %2413 = vmatprep.subr.mxu0 0.0
    %v2414 = vand.u32 %v2164, 4294901760
    %v2415 = vsub.f32 %v2164, %v2414
    %2416 = vmatpush1.msra.mxu0 %v2415
    %2417 = vmatprep.subr.mxu0 0.0
    %v2418 = vand.u32 %v2201, 4294901760
    %v2419 = vsub.f32 %v2201, %v2418
    %2420 = vmatpush1.msra.mxu0 %v2419
    %2421 = vmatprep.subr.mxu0 0.0
    %2422 = vmatpush1.msra.mxu0 0.0
    %2423 = vmatprep.subr.mxu0 0.0
    %2424 = vmatpush1.msra.mxu0 0.0
    %2425 = vmatprep.subr.mxu0 0.0
    %2426 = vmatpush1.msra.mxu0 0.0
    %2427 = vmatprep.subr.mxu0 0.0
    %2428 = vmatpush1.msra.mxu0 0.0
    %2429 = vmatprep.subr.mxu0 0.0
    %2430 = vmatpush1.msra.mxu0 0.0
    %2431 = vmatprep.subr.mxu0 0.0
    %2432 = vmatpush1.msra.mxu0 0.0
    %2433 = vmatprep.subr.mxu0 0.0
    %2434 = vmatpush1.msra.mxu0 0.0
    %2435 = vmatprep.subr.mxu0 0.0
    %2436 = vmatpush1.msra.mxu0 0.0
    %2437 = vmatprep.subr.mxu0 0.0
    %2438 = vmatpush1.msra.mxu0 0.0
    %2439 = vmatprep.subr.mxu0 0.0
    %2440 = vmatpush1.msra.mxu0 0.0
    %2441 = vmatprep.subr.mxu0 0.0
    %2442 = vmatpush1.msra.mxu0 0.0
    %2443 = vmatprep.subr.mxu0 0.0
    %2444 = vmatpush1.msra.mxu0 0.0
    %2445 = vmatprep.subr.mxu0 0.0
    %2446 = vmatpush1.msra.mxu0 0.0
    %2447 = vmatprep.subr.mxu0 0.0
    %2448 = vmatpush1.msra.mxu0 0.0
    %2449 = vmatprep.subr.mxu0 0.0
    %2450 = vmatpush1.msra.mxu0 0.0
    %2451 = vmatprep.subr.mxu0 0.0
    %2452 = vmatpush1.msra.mxu0 0.0
    %2453 = vmatprep.subr.mxu0 0.0
    %2454 = vmatpush1.msra.mxu0 0.0
    %2455 = vmatprep.subr.mxu0 0.0
    %2456 = vmatpush1.msra.mxu0 0.0
    %2457 = vmatprep.subr.mxu0 0.0
    %2458 = vmatpush1.msra.mxu0 0.0
    %2459 = vmatprep.subr.mxu0 0.0
    %2460 = vmatpush1.msra.mxu0 0.0
    %2461 = vmatprep.subr.mxu0 0.0
    %2462 = vmatpush1.msra.mxu0 0.0
    %2463 = vmatprep.subr.mxu0 0.0
    %2464 = vmatpush1.msra.mxu0 0.0
    %2465 = vmatprep.subr.mxu0 0.0
    %2466 = vmatpush1.msra.mxu0 0.0
    %2467 = vmatprep.subr.mxu0 0.0
    %2468 = vmatpush1.msra.mxu0 0.0
    %2469 = vmatprep.subr.mxu0 0.0
    %2470 = vmatpush1.msra.mxu0 0.0
    %2471 = vmatprep.subr.mxu0 0.0
    %2472 = vmatpush1.msra.mxu0 0.0
    %2473 = vmatprep.subr.mxu0 0.0
    %2474 = vmatpush1.msra.mxu0 0.0
    %2475 = vmatprep.subr.mxu0 0.0
    %2476 = vmatpush1.msra.mxu0 0.0
    %2477 = vmatprep.mubr.f32.mxu0 0.0
    %v2478 = vand.u32 %v2192, 4294901760
    %v2479 = vsub.f32 %v2192, %v2478
    %2480 = vmatmul.mubr.f32.gmra.mrb[0].mxu0 %v2479
    %v2481 = vpop.f32.mrb[0].mxu0
    %v2482 = vadd.f32 %v2390, %v2481
    %v2483 = vpop.f32.mrb[0].mxu0
    %2484 = vmatprep.mubr.f32.mxu0 0.0
    %v2485 = vand.u32 %v2195, 4294901760
    %v2486 = vsub.f32 %v2195, %v2485
    %2487 = vmatmul.mubr.f32.gmra.mrb[0].mxu0 %v2486
    %v2488 = vpop.f32.mrb[0].mxu0
    %v2489 = vadd.f32 %v2396, %v2488
    %v2490 = vpop.f32.mrb[0].mxu0
    %2491 = vmatprep.mubr.f32.mxu0 0.0
    %v2492 = vand.u32 %v2198, 4294901760
    %v2493 = vsub.f32 %v2198, %v2492
    %2494 = vmatmul.mubr.f32.gmra.mrb[0].mxu0 %v2493
    %v2495 = vpop.f32.mrb[0].mxu0
    %v2496 = vadd.f32 %v2402, %v2495
    %v2497 = vpop.f32.mrb[0].mxu0
    %2498 = vdwg.mxu0
    %2499 = vmatprep.subr.mxu0 0.0
    %v2500 = vand.u32 %v2162, 4294901760
    %2501 = vmatpush1.msra.mxu0 %v2500
    %2502 = vmatprep.subr.mxu0 0.0
    %v2503 = vand.u32 %v2163, 4294901760
    %2504 = vmatpush1.msra.mxu0 %v2503
    %2505 = vmatprep.subr.mxu0 0.0
    %v2506 = vand.u32 %v2164, 4294901760
    %2507 = vmatpush1.msra.mxu0 %v2506
    %2508 = vmatprep.subr.mxu0 0.0
    %v2509 = vand.u32 %v2201, 4294901760
    %2510 = vmatpush1.msra.mxu0 %v2509
    %2511 = vmatprep.subr.mxu0 0.0
    %2512 = vmatpush1.msra.mxu0 0.0
    %2513 = vmatprep.subr.mxu0 0.0
    %2514 = vmatpush1.msra.mxu0 0.0
    %2515 = vmatprep.subr.mxu0 0.0
    %2516 = vmatpush1.msra.mxu0 0.0
    %2517 = vmatprep.subr.mxu0 0.0
    %2518 = vmatpush1.msra.mxu0 0.0
    %2519 = vmatprep.subr.mxu0 0.0
    %2520 = vmatpush1.msra.mxu0 0.0
    %2521 = vmatprep.subr.mxu0 0.0
    %2522 = vmatpush1.msra.mxu0 0.0
    %2523 = vmatprep.subr.mxu0 0.0
    %2524 = vmatpush1.msra.mxu0 0.0
    %2525 = vmatprep.subr.mxu0 0.0
    %2526 = vmatpush1.msra.mxu0 0.0
    %2527 = vmatprep.subr.mxu0 0.0
    %2528 = vmatpush1.msra.mxu0 0.0
    %2529 = vmatprep.subr.mxu0 0.0
    %2530 = vmatpush1.msra.mxu0 0.0
    %2531 = vmatprep.subr.mxu0 0.0
    %2532 = vmatpush1.msra.mxu0 0.0
    %2533 = vmatprep.subr.mxu0 0.0
    %2534 = vmatpush1.msra.mxu0 0.0
    %2535 = vmatprep.subr.mxu0 0.0
    %2536 = vmatpush1.msra.mxu0 0.0
    %2537 = vmatprep.subr.mxu0 0.0
    %2538 = vmatpush1.msra.mxu0 0.0
    %2539 = vmatprep.subr.mxu0 0.0
    %2540 = vmatpush1.msra.mxu0 0.0
    %2541 = vmatprep.subr.mxu0 0.0
    %2542 = vmatpush1.msra.mxu0 0.0
    %2543 = vmatprep.subr.mxu0 0.0
    %2544 = vmatpush1.msra.mxu0 0.0
    %2545 = vmatprep.subr.mxu0 0.0
    %2546 = vmatpush1.msra.mxu0 0.0
    %2547 = vmatprep.subr.mxu0 0.0
    %2548 = vmatpush1.msra.mxu0 0.0
    %2549 = vmatprep.subr.mxu0 0.0
    %2550 = vmatpush1.msra.mxu0 0.0
    %2551 = vmatprep.subr.mxu0 0.0
    %2552 = vmatpush1.msra.mxu0 0.0
    %2553 = vmatprep.subr.mxu0 0.0
    %2554 = vmatpush1.msra.mxu0 0.0
    %2555 = vmatprep.subr.mxu0 0.0
    %2556 = vmatpush1.msra.mxu0 0.0
    %2557 = vmatprep.subr.mxu0 0.0
    %2558 = vmatpush1.msra.mxu0 0.0
    %2559 = vmatprep.subr.mxu0 0.0
    %2560 = vmatpush1.msra.mxu0 0.0
    %2561 = vmatprep.subr.mxu0 0.0
    %2562 = vmatpush1.msra.mxu0 0.0
    %2563 = vmatprep.subr.mxu0 0.0
    %2564 = vmatpush1.msra.mxu0 0.0
    %2565 = vmatprep.subr.mxu0 0.0
    %2566 = vmatpush1.msra.mxu0 0.0
    %2567 = vmatprep.mubr.f32.mxu0 0.0
    %v2568 = vand.u32 %v2192, 4294901760
    %v2569 = vsub.f32 %v2192, %v2568
    %v2570 = vand.u32 %v2569, 4294901760
    %2571 = vmatmul.mubr.f32.gmra.mrb[0].mxu0 %v2570
    %v2572 = vpop.f32.mrb[0].mxu0
    %v2573 = vadd.f32 %v2482, %v2572
    %v2574 = vpop.f32.mrb[0].mxu0
    %2575 = vmatprep.mubr.f32.mxu0 0.0
    %v2576 = vand.u32 %v2195, 4294901760
    %v2577 = vsub.f32 %v2195, %v2576
    %v2578 = vand.u32 %v2577, 4294901760
    %2579 = vmatmul.mubr.f32.gmra.mrb[0].mxu0 %v2578
    %v2580 = vpop.f32.mrb[0].mxu0
    %v2581 = vadd.f32 %v2489, %v2580
    %v2582 = vpop.f32.mrb[0].mxu0
    %2583 = vmatprep.mubr.f32.mxu0 0.0
    %v2584 = vand.u32 %v2198, 4294901760
    %v2585 = vsub.f32 %v2198, %v2584
    %v2586 = vand.u32 %v2585, 4294901760
    %2587 = vmatmul.mubr.f32.gmra.mrb[0].mxu0 %v2586
    %v2588 = vpop.f32.mrb[0].mxu0
    %v2589 = vadd.f32 %v2496, %v2588
    %v2590 = vpop.f32.mrb[0].mxu0
    %2591 = vdwg.mxu0
    %2592 = vmatprep.subr.mxu0 0.0
    %v2593 = vand.u32 %v2162, 4294901760
    %v2594 = vsub.f32 %v2162, %v2593
    %v2595 = vand.u32 %v2594, 4294901760
    %2596 = vmatpush1.msra.mxu0 %v2595
    %2597 = vmatprep.subr.mxu0 0.0
    %v2598 = vand.u32 %v2163, 4294901760
    %v2599 = vsub.f32 %v2163, %v2598
    %v2600 = vand.u32 %v2599, 4294901760
    %2601 = vmatpush1.msra.mxu0 %v2600
    %2602 = vmatprep.subr.mxu0 0.0
    %v2603 = vand.u32 %v2164, 4294901760
    %v2604 = vsub.f32 %v2164, %v2603
    %v2605 = vand.u32 %v2604, 4294901760
    %2606 = vmatpush1.msra.mxu0 %v2605
    %2607 = vmatprep.subr.mxu0 0.0
    %v2608 = vand.u32 %v2201, 4294901760
    %v2609 = vsub.f32 %v2201, %v2608
    %v2610 = vand.u32 %v2609, 4294901760
    %2611 = vmatpush1.msra.mxu0 %v2610
    %2612 = vmatprep.subr.mxu0 0.0
    %2613 = vmatpush1.msra.mxu0 0.0
    %2614 = vmatprep.subr.mxu0 0.0
    %2615 = vmatpush1.msra.mxu0 0.0
    %2616 = vmatprep.subr.mxu0 0.0
    %2617 = vmatpush1.msra.mxu0 0.0
    %2618 = vmatprep.subr.mxu0 0.0
    %2619 = vmatpush1.msra.mxu0 0.0
    %2620 = vmatprep.subr.mxu0 0.0
    %2621 = vmatpush1.msra.mxu0 0.0
    %2622 = vmatprep.subr.mxu0 0.0
    %2623 = vmatpush1.msra.mxu0 0.0
    %2624 = vmatprep.subr.mxu0 0.0
    %2625 = vmatpush1.msra.mxu0 0.0
    %2626 = vmatprep.subr.mxu0 0.0
    %2627 = vmatpush1.msra.mxu0 0.0
    %2628 = vmatprep.subr.mxu0 0.0
    %2629 = vmatpush1.msra.mxu0 0.0
    %2630 = vmatprep.subr.mxu0 0.0
    %2631 = vmatpush1.msra.mxu0 0.0
    %2632 = vmatprep.subr.mxu0 0.0
    %2633 = vmatpush1.msra.mxu0 0.0
    %2634 = vmatprep.subr.mxu0 0.0
    %2635 = vmatpush1.msra.mxu0 0.0
    %2636 = vmatprep.subr.mxu0 0.0
    %2637 = vmatpush1.msra.mxu0 0.0
    %2638 = vmatprep.subr.mxu0 0.0
    %2639 = vmatpush1.msra.mxu0 0.0
    %2640 = vmatprep.subr.mxu0 0.0
    %2641 = vmatpush1.msra.mxu0 0.0
    %2642 = vmatprep.subr.mxu0 0.0
    %2643 = vmatpush1.msra.mxu0 0.0
    %2644 = vmatprep.subr.mxu0 0.0
    %2645 = vmatpush1.msra.mxu0 0.0
    %2646 = vmatprep.subr.mxu0 0.0
    %2647 = vmatpush1.msra.mxu0 0.0
    %2648 = vmatprep.subr.mxu0 0.0
    %2649 = vmatpush1.msra.mxu0 0.0
    %2650 = vmatprep.subr.mxu0 0.0
    %2651 = vmatpush1.msra.mxu0 0.0
    %2652 = vmatprep.subr.mxu0 0.0
    %2653 = vmatpush1.msra.mxu0 0.0
    %2654 = vmatprep.subr.mxu0 0.0
    %2655 = vmatpush1.msra.mxu0 0.0
    %2656 = vmatprep.subr.mxu0 0.0
    %2657 = vmatpush1.msra.mxu0 0.0
    %2658 = vmatprep.subr.mxu0 0.0
    %2659 = vmatpush1.msra.mxu0 0.0
    %2660 = vmatprep.subr.mxu0 0.0
    %2661 = vmatpush1.msra.mxu0 0.0
    %2662 = vmatprep.subr.mxu0 0.0
    %2663 = vmatpush1.msra.mxu0 0.0
    %2664 = vmatprep.subr.mxu0 0.0
    %2665 = vmatpush1.msra.mxu0 0.0
    %2666 = vmatprep.subr.mxu0 0.0
    %2667 = vmatpush1.msra.mxu0 0.0
    %2668 = vmatprep.mubr.f32.mxu0 0.0
    %v2669 = vand.u32 %v2192, 4294901760
    %2670 = vmatmul.mubr.f32.gmra.mrb[0].mxu0 %v2669
    %v2671 = vpop.f32.mrb[0].mxu0
    %v2672 = vadd.f32 %v2573, %v2671
    %v2673 = vpop.f32.mrb[0].mxu0
    %2674 = vmatprep.mubr.f32.mxu0 0.0
    %v2675 = vand.u32 %v2195, 4294901760
    %2676 = vmatmul.mubr.f32.gmra.mrb[0].mxu0 %v2675
    %v2677 = vpop.f32.mrb[0].mxu0
    %v2678 = vadd.f32 %v2581, %v2677
    %v2679 = vpop.f32.mrb[0].mxu0
    %2680 = vmatprep.mubr.f32.mxu0 0.0
    %v2681 = vand.u32 %v2198, 4294901760
    %2682 = vmatmul.mubr.f32.gmra.mrb[0].mxu0 %v2681
    %v2683 = vpop.f32.mrb[0].mxu0
    %v2684 = vadd.f32 %v2589, %v2683
    %v2685 = vpop.f32.mrb[0].mxu0
    %2686 = vdwg.mxu0
    %2687 = vmatprep.subr.mxu0 0.0
    %v2688 = vand.u32 %v2162, 4294901760
    %2689 = vmatpush1.msra.mxu0 %v2688
    %2690 = vmatprep.subr.mxu0 0.0
    %v2691 = vand.u32 %v2163, 4294901760
    %2692 = vmatpush1.msra.mxu0 %v2691
    %2693 = vmatprep.subr.mxu0 0.0
    %v2694 = vand.u32 %v2164, 4294901760
    %2695 = vmatpush1.msra.mxu0 %v2694
    %2696 = vmatprep.subr.mxu0 0.0
    %v2697 = vand.u32 %v2201, 4294901760
    %2698 = vmatpush1.msra.mxu0 %v2697
    %2699 = vmatprep.subr.mxu0 0.0
    %2700 = vmatpush1.msra.mxu0 0.0
    %2701 = vmatprep.subr.mxu0 0.0
    %2702 = vmatpush1.msra.mxu0 0.0
    %2703 = vmatprep.subr.mxu0 0.0
    %2704 = vmatpush1.msra.mxu0 0.0
    %2705 = vmatprep.subr.mxu0 0.0
    %2706 = vmatpush1.msra.mxu0 0.0
    %2707 = vmatprep.subr.mxu0 0.0
    %2708 = vmatpush1.msra.mxu0 0.0
    %2709 = vmatprep.subr.mxu0 0.0
    %2710 = vmatpush1.msra.mxu0 0.0
    %2711 = vmatprep.subr.mxu0 0.0
    %2712 = vmatpush1.msra.mxu0 0.0
    %2713 = vmatprep.subr.mxu0 0.0
    %2714 = vmatpush1.msra.mxu0 0.0
    %2715 = vmatprep.subr.mxu0 0.0
    %2716 = vmatpush1.msra.mxu0 0.0
    %2717 = vmatprep.subr.mxu0 0.0
    %2718 = vmatpush1.msra.mxu0 0.0
    %2719 = vmatprep.subr.mxu0 0.0
    %2720 = vmatpush1.msra.mxu0 0.0
    %2721 = vmatprep.subr.mxu0 0.0
    %2722 = vmatpush1.msra.mxu0 0.0
    %2723 = vmatprep.subr.mxu0 0.0
    %2724 = vmatpush1.msra.mxu0 0.0
    %2725 = vmatprep.subr.mxu0 0.0
    %2726 = vmatpush1.msra.mxu0 0.0
    %2727 = vmatprep.subr.mxu0 0.0
    %2728 = vmatpush1.msra.mxu0 0.0
    %2729 = vmatprep.subr.mxu0 0.0
    %2730 = vmatpush1.msra.mxu0 0.0
    %2731 = vmatprep.subr.mxu0 0.0
    %2732 = vmatpush1.msra.mxu0 0.0
    %2733 = vmatprep.subr.mxu0 0.0
    %2734 = vmatpush1.msra.mxu0 0.0
    %2735 = vmatprep.subr.mxu0 0.0
    %2736 = vmatpush1.msra.mxu0 0.0
    %2737 = vmatprep.subr.mxu0 0.0
    %2738 = vmatpush1.msra.mxu0 0.0
    %2739 = vmatprep.subr.mxu0 0.0
    %2740 = vmatpush1.msra.mxu0 0.0
    %2741 = vmatprep.subr.mxu0 0.0
    %2742 = vmatpush1.msra.mxu0 0.0
    %2743 = vmatprep.subr.mxu0 0.0
    %2744 = vmatpush1.msra.mxu0 0.0
    %2745 = vmatprep.subr.mxu0 0.0
    %2746 = vmatpush1.msra.mxu0 0.0
    %2747 = vmatprep.subr.mxu0 0.0
    %2748 = vmatpush1.msra.mxu0 0.0
    %2749 = vmatprep.subr.mxu0 0.0
    %2750 = vmatpush1.msra.mxu0 0.0
    %2751 = vmatprep.subr.mxu0 0.0
    %2752 = vmatpush1.msra.mxu0 0.0
    %2753 = vmatprep.subr.mxu0 0.0
    %2754 = vmatpush1.msra.mxu0 0.0
    %2755 = vmatprep.mubr.f32.mxu0 0.0
    %v2756 = vand.u32 %v2192, 4294901760
    %2757 = vmatmul.mubr.f32.gmra.mrb[0].mxu0 %v2756
    %v2758 = vpop.f32.mrb[0].mxu0
    %v2759 = vadd.f32 %v2672, %v2758
    %v2760 = vpop.f32.mrb[0].mxu0
    %2761 = vmatprep.mubr.f32.mxu0 0.0
    %v2762 = vand.u32 %v2195, 4294901760
    %2763 = vmatmul.mubr.f32.gmra.mrb[0].mxu0 %v2762
    %v2764 = vpop.f32.mrb[0].mxu0
    %v2765 = vadd.f32 %v2678, %v2764
    %v2766 = vpop.f32.mrb[0].mxu0
    %2767 = vmatprep.mubr.f32.mxu0 0.0
    %v2768 = vand.u32 %v2198, 4294901760
    %2769 = vmatmul.mubr.f32.gmra.mrb[0].mxu0 %v2768
    %v2770 = vpop.f32.mrb[0].mxu0
    %v2771 = vadd.f32 %v2684, %v2770
    %v2772 = vpop.f32.mrb[0].mxu0
    %2773 = vdwg.mxu0
    %v2774 = vmul.f32 %v2759, 0.5
    %v2775 = vmul.f32 %v2765, 0.5
    %v2776 = vmul.f32 %v2771, 0.5
    %v2777 = vtanh.pop %v2774
    %v2778 = vtanh.pop %v2775
    %v2779 = vtanh.pop %v2776
    %v2780 = vld [vmem:[%s6] sm:$0xff]
    %v2781 = vld [vmem:[%s6 + $0x8] sm:$0xf]
    %2783 = vset.pattern.permute.xlu0 0
    %2784 = vperm.xlu0 %2783, %v2780
    %v2785 = vpop.permute.xlu0 %2784
    %2788 = vset.pattern.permute.xlu0 0
    %2789 = vperm.xlu0 %2788, %v2781
    %v2790 = vpop.permute.xlu0 %2789
    %v2792 = vmul.f32 %v2785, %v2777
    %v2793 = vmul.f32 %v2790, %v2778
    %v2796 = vrot.slane %v2778, 4
    %v2797 = vrot.slane %v2779, 4
    %v2798 = vsel %vm1463, %v2796, %v2797
    %v2801 = vmul.f32 %v2792, %v2798
    %v2802 = vmul.f32 %v2793, %v2797
    %v2803 = vsel %vm1463, %v2802, 0.0
    %v2804 = vadd.f32 %v2801, %v2803
    %v2805 = vrot.slane %v2804, 4
    %v2806 = vadd.f32 %v2804, %v2805
    %v2807 = vrot.slane %v2806, 2
    %v2808 = vadd.f32 %v2806, %v2807
    %v2809 = vrot.slane %v2808, 1
    %v2810 = vadd.f32 %v2808, %v2809
    %2811 = vst [vmem:[#allocation2] sm:$0x1] %v2810
    // Predicated region
    $region30: #{tpu_custom_call.1} parent=1 // pred_check
      _
    $region31: #{tpu_custom_call.1} parent=1 // pred_check_branch
      %2813 = sbr.rel (0) target = $region33
    $region32: #{tpu_custom_call.1} parent=1 // pred_region
      %s2815 = ssub.s32 16, 16
      %2816 = vsyncadd [#allocation3], %s2815
      %s2818 = sshll.u32 [#allocation2], 4
      %s2819 = int_to_ptr.vmem [resolvable:$true] %s2818
      %2821 = dma.vmem_to_hbm [thread:$0]  %s2819, 16, %s7, [#allocation3]
    $region33: #{tpu_custom_call.1} parent=1 // pred_fallthru
      _
    // Predicated region
    $region34: #{tpu_custom_call.1} parent=1 // pred_check
      _
    $region35: #{tpu_custom_call.1} parent=1 // pred_check_branch
      %2823 = sbr.rel (0) target = $region37
    $region36: #{tpu_custom_call.1} parent=1 // pred_region
      %2824 = dma.done [#allocation3], 16
    $region37: #{tpu_custom_call.1} parent=1 // pred_fallthru
      _
    %2825 = vsyncpa [#allocation3], 1

</llo_original>
